<compile_context>
chip_gen: v7x
topology: tpu7x:2x2x1
jax: 0.10.0
libtpu: 0.0.40
codegen_flags: <defaults>
</compile_context>

<pallas_src>
import functools

import jax
import jax.numpy as jnp
import numpy as np
from jax.experimental import pallas as pl
from jax.experimental.pallas import tpu as pltpu


def sentence_attention_kernel(msk_ref, ctx_ref, nod_ref, wsT_ref, wpT_ref,
                              b_ref, wa_ref, ba_ref, out_ref, *, S, D):
    # msk_ref: [g, S] (1.0 = padded), ctx_ref/nod_ref: [g, S*D] lane-dense,
    # wsT/wpT: [D, H], b/wa: [1, H], ba: [1, 1], out: [g, D].
    msk = msk_ref[...]                                           # [g, S]
    # Reference quirk: normalizes by the count of PADDED positions.
    sent_num = jnp.sum(msk, axis=1, keepdims=True)               # [g, 1]

    wsT = wsT_ref[...]
    wpT = wpT_ref[...]
    b = b_ref[...]
    wa = wa_ref[...]
    ba = ba_ref[...]

    # S is small (sentences per node); unroll statically over 32-lane slices.
    acc = None
    for s in range(S):
        ctx_s = ctx_ref[:, s * D:(s + 1) * D]                    # [g, D]
        nod_s = nod_ref[:, s * D:(s + 1) * D]                    # [g, D]
        # Two MXU dots summed (no in-kernel concatenate).
        z_s = (jnp.dot(ctx_s, wsT, preferred_element_type=jnp.float32)
               + jnp.dot(nod_s, wpT, preferred_element_type=jnp.float32)
               + b)                                              # [g, H]
        t_s = jnp.tanh(z_s)                                      # EUP
        # Width-1 projection as VPU multiply + lane reduce.
        logit_s = jnp.sum(t_s * wa, axis=1, keepdims=True) + ba  # [g, 1]
        # relu(masked_fill(logit, -1e5)) == relu(logit) * (1 - mask), exactly.
        att_s = jnp.maximum(logit_s, 0.0) * (1.0 - msk[:, s:s + 1])  # [g, 1]
        contrib = att_s * ctx_s                                  # [g, D]
        acc = contrib if acc is None else acc + contrib

    inv = pl.reciprocal(sent_num + jnp.float32(1e-10), approx=False)  # [g, 1]
    out_ref[...] = (acc * inv).astype(out_ref.dtype)


def _pick_row_block(G, S, D):
    """Largest sublane-aligned row block that (a) keeps double-buffered ctx+nod
    input blocks comfortably inside the default scoped-VMEM budget and (b)
    leaves >= 2 grid steps when possible (v7x has two TensorCores and the
    input DMA pipelines across steps)."""
    if G <= 8:
        return max(int(G), 1)
    bytes_per_row = 2 * S * D * 4                 # ctx + nod rows, f32
    vmem_budget = 8 * 1024 * 1024                 # leaves lots of headroom of the 32 MiB default
    max_rows = max(8, min(512, vmem_budget // (2 * bytes_per_row)))
    max_rows -= max_rows % 8
    # Aim for >= 2 grid steps: block <= ceil(G/2), rounded up to a multiple of 8.
    half = (((G + 1) // 2) + 7) // 8 * 8
    return int(max(8, min(max_rows, half)))


def sentence_attention(att_padding_matrix, context_word_att, node_embedding,
                       ws, bs, wp, bp, wa, ba):
    """att_padding_matrix: [B,N,S,1] bool/0-1 (True = padded)
       context_word_att / node_embedding: [B,N,S,D]
       ws, wp: [H,D]; bs, bp: [H]; wa: [1,H]; ba: [1]   (PyTorch Linear layout)
    """
    B, N, S, D = context_word_att.shape
    H = ws.shape[0]
    G = B * N

    # Lane-dense layouts for the mem-bound inputs.
    ctx = context_word_att.astype(jnp.float32).reshape(G, S * D)
    nod = node_embedding.astype(jnp.float32).reshape(G, S * D)
    msk = att_padding_matrix.astype(jnp.float32).reshape(G, S)

    ws_t = ws.T.astype(jnp.float32)                               # [D, H]
    wp_t = wp.T.astype(jnp.float32)                               # [D, H]
    b_cat = (bs + bp).reshape(1, H).astype(jnp.float32)           # shared bias of the fused add
    wa_row = wa.reshape(1, H).astype(jnp.float32)
    ba_sc = ba.reshape(1, 1).astype(jnp.float32)

    g_blk = _pick_row_block(G, S, D)
    num_blocks = pl.cdiv(G, g_blk)
    g_pad = num_blocks * g_blk
    if g_pad != G:
        pad = g_pad - G
        ctx = jnp.pad(ctx, ((0, pad), (0, 0)))
        nod = jnp.pad(nod, ((0, pad), (0, 0)))
        msk = jnp.pad(msk, ((0, pad), (0, 0)), constant_values=1.0)

    kernel = functools.partial(sentence_attention_kernel, S=S, D=D)

    out = pl.pallas_call(
        kernel,
        out_shape=jax.ShapeDtypeStruct((g_pad, D), jnp.float32),
        grid=(num_blocks,),
        in_specs=[
            pl.BlockSpec((g_blk, S), lambda i: (i, 0)),           # padding mask [G, S]
            pl.BlockSpec((g_blk, S * D), lambda i: (i, 0)),       # context_word_att [G, S*D]
            pl.BlockSpec((g_blk, S * D), lambda i: (i, 0)),       # node_embedding   [G, S*D]
            pl.BlockSpec((D, H), lambda i: (0, 0)),               # Ws^T
            pl.BlockSpec((D, H), lambda i: (0, 0)),               # Wp^T
            pl.BlockSpec((1, H), lambda i: (0, 0)),               # bs + bp
            pl.BlockSpec((1, H), lambda i: (0, 0)),               # wa
            pl.BlockSpec((1, 1), lambda i: (0, 0)),               # ba
        ],
        out_specs=pl.BlockSpec((g_blk, D), lambda i: (i, 0)),
        compiler_params=pltpu.CompilerParams(
            dimension_semantics=("parallel",)),
    )(msk, ctx, nod, ws_t, wp_t, b_cat, wa_row, ba_sc)

    return out[:G].reshape(B, N, D)


def xavier_uniform(key, shape):
    fan_out, fan_in = shape
    bound = np.sqrt(6.0 / (fan_in + fan_out))
    return jax.random.uniform(key, shape, jnp.float32, -bound, bound)


def reference(att_padding_matrix, context_word_att, node_embedding,
              ws, bs, wp, bp, wa, ba):
    sent_feat = context_word_att @ ws.T + bs
    dis_feat = node_embedding @ wp.T + bp
    all_feat = jnp.tanh(sent_feat + dis_feat) @ wa.T + ba          # [B,N,S,1]
    sent_num = att_padding_matrix.astype(jnp.float32).sum(axis=2)  # [B,N,1]
    all_feat = jnp.where(att_padding_matrix, -100000.0, all_feat)
    att_matrix = jax.nn.relu(all_feat)
    return jnp.sum(att_matrix * context_word_att, axis=2) / (sent_num + 1e-10)


if __name__ == "__main__":
    # B batches, N nodes, S sentences per node, D = input_dim, H = hidden_dim.
    B, N, S, D, H = 2, 8, 8, 32, 32

    key = jax.random.PRNGKey(0)
    k_m, k_c, k_n, k_ws, k_bs, k_wp, k_bp, k_wa, k_ba = jax.random.split(key, 9)

    att_padding_matrix = jax.random.uniform(k_m, (B, N, S, 1)) > 0.7
    # Guarantee at least one padded slot per (b, n) row so the reference's
    # 1 / (sent_num + 1e-10) stays well conditioned for the comparison.
    att_padding_matrix = att_padding_matrix.at[:, :, S - 1, :].set(True)

    context_word_att = jax.random.normal(k_c, (B, N, S, D), jnp.float32)
    node_embedding = jax.random.normal(k_n, (B, N, S, D), jnp.float32)

    ws = xavier_uniform(k_ws, (H, D))
    wp = xavier_uniform(k_wp, (H, D))
    wa = xavier_uniform(k_wa, (1, H))
    bs = jax.random.uniform(k_bs, (H,), jnp.float32, -0.1, 0.1)
    bp = jax.random.uniform(k_bp, (H,), jnp.float32, -0.1, 0.1)
    ba = jax.random.uniform(k_ba, (1,), jnp.float32, -0.1, 0.1)

    out = sentence_attention(att_padding_matrix, context_word_att, node_embedding,
                             ws, bs, wp, bp, wa, ba)
    out = jax.block_until_ready(out)

    ref = reference(att_padding_matrix, context_word_att, node_embedding,
                    ws, bs, wp, bp, wa, ba)
    np.testing.assert_allclose(np.asarray(out), np.asarray(ref), rtol=1e-4, atol=1e-4)

    print("KERNEL_OK")
</pallas_src>

<mosaic_0001>
module attributes {stable_mosaic.version = 11 : i64} {
  func.func @sentence_attention_kernel(%arg0: i32, %arg1: memref<8x8xf32, #tpu.memory_space<vmem>>, %arg2: memref<8x256xf32, #tpu.memory_space<vmem>>, %arg3: memref<8x256xf32, #tpu.memory_space<vmem>>, %arg4: memref<32x32xf32, #tpu.memory_space<vmem>>, %arg5: memref<32x32xf32, #tpu.memory_space<vmem>>, %arg6: memref<1x32xf32, #tpu.memory_space<vmem>>, %arg7: memref<1x32xf32, #tpu.memory_space<vmem>>, %arg8: memref<1x1xf32, #tpu.memory_space<vmem>>, %arg9: memref<8x32xf32, #tpu.memory_space<vmem>>) attributes {dimension_semantics = [#tpu.dimension_semantics<parallel>], iteration_bounds = array<i64: 2>, scalar_prefetch = 0 : i64, scratch_operands = 0 : i64, tpu.core_type = #tpu.core_type<tc>, window_params = [{transform_indices = @transform_0, window_bounds = array<i64: 8, 8>}, {transform_indices = @transform_1, window_bounds = array<i64: 8, 256>}, {transform_indices = @transform_2, window_bounds = array<i64: 8, 256>}, {pipeline_mode = #tpu.pipeline_mode<synchronous>, transform_indices = @transform_3, window_bounds = array<i64: 32, 32>}, {pipeline_mode = #tpu.pipeline_mode<synchronous>, transform_indices = @transform_4, window_bounds = array<i64: 32, 32>}, {pipeline_mode = #tpu.pipeline_mode<synchronous>, transform_indices = @transform_5, window_bounds = array<i64: 1, 32>}, {pipeline_mode = #tpu.pipeline_mode<synchronous>, transform_indices = @transform_6, window_bounds = array<i64: 1, 32>}, {pipeline_mode = #tpu.pipeline_mode<synchronous>, transform_indices = @transform_7, window_bounds = array<i64: 1, 1>}, {transform_indices = @transform_8, window_bounds = array<i64: 8, 32>}]} {
    %c0 = arith.constant 0 : index
    %c0_0 = arith.constant 0 : index
    %0 = vector.load %arg1[%c0, %c0_0] : memref<8x8xf32, #tpu.memory_space<vmem>>, vector<8x8xf32>
    %cst = arith.constant dense<0.000000e+00> : vector<8xf32>
    %1 = vector.multi_reduction <add>, %0, %cst [1] : vector<8x8xf32> to vector<8xf32>
    %2 = vector.shape_cast %1 : vector<8xf32> to vector<8x1xf32>
    %c0_1 = arith.constant 0 : index
    %c0_2 = arith.constant 0 : index
    %3 = vector.load %arg4[%c0_1, %c0_2] : memref<32x32xf32, #tpu.memory_space<vmem>>, vector<32x32xf32>
    %c0_3 = arith.constant 0 : index
    %c0_4 = arith.constant 0 : index
    %4 = vector.load %arg5[%c0_3, %c0_4] : memref<32x32xf32, #tpu.memory_space<vmem>>, vector<32x32xf32>
    %c0_5 = arith.constant 0 : index
    %c0_6 = arith.constant 0 : index
    %5 = vector.load %arg6[%c0_5, %c0_6] : memref<1x32xf32, #tpu.memory_space<vmem>>, vector<1x32xf32>
    %c0_7 = arith.constant 0 : index
    %c0_8 = arith.constant 0 : index
    %6 = vector.load %arg7[%c0_7, %c0_8] : memref<1x32xf32, #tpu.memory_space<vmem>>, vector<1x32xf32>
    %c0_9 = arith.constant 0 : index
    %c0_10 = arith.constant 0 : index
    %7 = vector.load %arg8[%c0_9, %c0_10] : memref<1x1xf32, #tpu.memory_space<vmem>>, vector<1x1xf32>
    %c0_11 = arith.constant 0 : index
    %c0_12 = arith.constant 0 : index
    %8 = vector.load %arg2[%c0_11, %c0_12] : memref<8x256xf32, #tpu.memory_space<vmem>>, vector<8x32xf32>
    %c0_13 = arith.constant 0 : index
    %c0_14 = arith.constant 0 : index
    %9 = vector.load %arg3[%c0_13, %c0_14] : memref<8x256xf32, #tpu.memory_space<vmem>>, vector<8x32xf32>
    %cst_15 = arith.constant dense<0.000000e+00> : vector<8x32xf32>
    %10 = tpu.matmul %8, %3, %cst_15 {dimension_numbers = #tpu.dot_dimension_numbers<[1], [0], [0], [1], [0, 0, 1, 1], [], []>} : vector<8x32xf32>, vector<32x32xf32>, vector<8x32xf32> -> vector<8x32xf32>
    %cst_16 = arith.constant dense<0.000000e+00> : vector<8x32xf32>
    %11 = tpu.matmul %9, %4, %cst_16 {dimension_numbers = #tpu.dot_dimension_numbers<[1], [0], [0], [1], [0, 0, 1, 1], [], []>} : vector<8x32xf32>, vector<32x32xf32>, vector<8x32xf32> -> vector<8x32xf32>
    %12 = arith.addf %10, %11 : vector<8x32xf32>
    %13 = vector.broadcast %5 : vector<1x32xf32> to vector<8x32xf32>
    %14 = arith.addf %12, %13 : vector<8x32xf32>
    %15 = math.tanh %14 : vector<8x32xf32>
    %16 = vector.broadcast %6 : vector<1x32xf32> to vector<8x32xf32>
    %17 = arith.mulf %15, %16 : vector<8x32xf32>
    %cst_17 = arith.constant dense<0.000000e+00> : vector<8xf32>
    %18 = vector.multi_reduction <add>, %17, %cst_17 [1] : vector<8x32xf32> to vector<8xf32>
    %19 = vector.shape_cast %18 : vector<8xf32> to vector<8x1xf32>
    %20 = vector.broadcast %7 : vector<1x1xf32> to vector<8x1xf32>
    %21 = arith.addf %19, %20 : vector<8x1xf32>
    %cst_18 = arith.constant 0.000000e+00 : f32
    %22 = vector.broadcast %cst_18 : f32 to vector<8x1xf32>
    %23 = arith.maximumf %21, %22 : vector<8x1xf32>
    %24 = vector.extract_strided_slice %0 {offsets = [0, 0], sizes = [8, 1], strides = [1, 1]} : vector<8x8xf32> to vector<8x1xf32>
    %cst_19 = arith.constant 1.000000e+00 : f32
    %25 = vector.broadcast %cst_19 : f32 to vector<8x1xf32>
    %26 = arith.subf %25, %24 : vector<8x1xf32>
    %27 = arith.mulf %23, %26 : vector<8x1xf32>
    %28 = vector.broadcast %27 : vector<8x1xf32> to vector<8x32xf32>
    %29 = arith.mulf %28, %8 : vector<8x32xf32>
    %c0_20 = arith.constant 0 : index
    %c32 = arith.constant 32 : index
    %30 = vector.load %arg2[%c0_20, %c32] : memref<8x256xf32, #tpu.memory_space<vmem>>, vector<8x32xf32>
    %c0_21 = arith.constant 0 : index
    %c32_22 = arith.constant 32 : index
    %31 = vector.load %arg3[%c0_21, %c32_22] : memref<8x256xf32, #tpu.memory_space<vmem>>, vector<8x32xf32>
    %cst_23 = arith.constant dense<0.000000e+00> : vector<8x32xf32>
    %32 = tpu.matmul %30, %3, %cst_23 {dimension_numbers = #tpu.dot_dimension_numbers<[1], [0], [0], [1], [0, 0, 1, 1], [], []>} : vector<8x32xf32>, vector<32x32xf32>, vector<8x32xf32> -> vector<8x32xf32>
    %cst_24 = arith.constant dense<0.000000e+00> : vector<8x32xf32>
    %33 = tpu.matmul %31, %4, %cst_24 {dimension_numbers = #tpu.dot_dimension_numbers<[1], [0], [0], [1], [0, 0, 1, 1], [], []>} : vector<8x32xf32>, vector<32x32xf32>, vector<8x32xf32> -> vector<8x32xf32>
    %34 = arith.addf %32, %33 : vector<8x32xf32>
    %35 = vector.broadcast %5 : vector<1x32xf32> to vector<8x32xf32>
    %36 = arith.addf %34, %35 : vector<8x32xf32>
    %37 = math.tanh %36 : vector<8x32xf32>
    %38 = vector.broadcast %6 : vector<1x32xf32> to vector<8x32xf32>
    %39 = arith.mulf %37, %38 : vector<8x32xf32>
    %cst_25 = arith.constant dense<0.000000e+00> : vector<8xf32>
    %40 = vector.multi_reduction <add>, %39, %cst_25 [1] : vector<8x32xf32> to vector<8xf32>
    %41 = vector.shape_cast %40 : vector<8xf32> to vector<8x1xf32>
    %42 = vector.broadcast %7 : vector<1x1xf32> to vector<8x1xf32>
    %43 = arith.addf %41, %42 : vector<8x1xf32>
    %cst_26 = arith.constant 0.000000e+00 : f32
    %44 = vector.broadcast %cst_26 : f32 to vector<8x1xf32>
    %45 = arith.maximumf %43, %44 : vector<8x1xf32>
    %46 = vector.extract_strided_slice %0 {offsets = [0, 1], sizes = [8, 1], strides = [1, 1]} : vector<8x8xf32> to vector<8x1xf32>
    %cst_27 = arith.constant 1.000000e+00 : f32
    %47 = vector.broadcast %cst_27 : f32 to vector<8x1xf32>
    %48 = arith.subf %47, %46 : vector<8x1xf32>
    %49 = arith.mulf %45, %48 : vector<8x1xf32>
    %50 = vector.broadcast %49 : vector<8x1xf32> to vector<8x32xf32>
    %51 = arith.mulf %50, %30 : vector<8x32xf32>
    %52 = arith.addf %29, %51 : vector<8x32xf32>
    %c0_28 = arith.constant 0 : index
    %c64 = arith.constant 64 : index
    %53 = vector.load %arg2[%c0_28, %c64] : memref<8x256xf32, #tpu.memory_space<vmem>>, vector<8x32xf32>
    %c0_29 = arith.constant 0 : index
    %c64_30 = arith.constant 64 : index
    %54 = vector.load %arg3[%c0_29, %c64_30] : memref<8x256xf32, #tpu.memory_space<vmem>>, vector<8x32xf32>
    %cst_31 = arith.constant dense<0.000000e+00> : vector<8x32xf32>
    %55 = tpu.matmul %53, %3, %cst_31 {dimension_numbers = #tpu.dot_dimension_numbers<[1], [0], [0], [1], [0, 0, 1, 1], [], []>} : vector<8x32xf32>, vector<32x32xf32>, vector<8x32xf32> -> vector<8x32xf32>
    %cst_32 = arith.constant dense<0.000000e+00> : vector<8x32xf32>
    %56 = tpu.matmul %54, %4, %cst_32 {dimension_numbers = #tpu.dot_dimension_numbers<[1], [0], [0], [1], [0, 0, 1, 1], [], []>} : vector<8x32xf32>, vector<32x32xf32>, vector<8x32xf32> -> vector<8x32xf32>
    %57 = arith.addf %55, %56 : vector<8x32xf32>
    %58 = vector.broadcast %5 : vector<1x32xf32> to vector<8x32xf32>
    %59 = arith.addf %57, %58 : vector<8x32xf32>
    %60 = math.tanh %59 : vector<8x32xf32>
    %61 = vector.broadcast %6 : vector<1x32xf32> to vector<8x32xf32>
    %62 = arith.mulf %60, %61 : vector<8x32xf32>
    %cst_33 = arith.constant dense<0.000000e+00> : vector<8xf32>
    %63 = vector.multi_reduction <add>, %62, %cst_33 [1] : vector<8x32xf32> to vector<8xf32>
    %64 = vector.shape_cast %63 : vector<8xf32> to vector<8x1xf32>
    %65 = vector.broadcast %7 : vector<1x1xf32> to vector<8x1xf32>
    %66 = arith.addf %64, %65 : vector<8x1xf32>
    %cst_34 = arith.constant 0.000000e+00 : f32
    %67 = vector.broadcast %cst_34 : f32 to vector<8x1xf32>
    %68 = arith.maximumf %66, %67 : vector<8x1xf32>
    %69 = vector.extract_strided_slice %0 {offsets = [0, 2], sizes = [8, 1], strides = [1, 1]} : vector<8x8xf32> to vector<8x1xf32>
    %cst_35 = arith.constant 1.000000e+00 : f32
    %70 = vector.broadcast %cst_35 : f32 to vector<8x1xf32>
    %71 = arith.subf %70, %69 : vector<8x1xf32>
    %72 = arith.mulf %68, %71 : vector<8x1xf32>
    %73 = vector.broadcast %72 : vector<8x1xf32> to vector<8x32xf32>
    %74 = arith.mulf %73, %53 : vector<8x32xf32>
    %75 = arith.addf %52, %74 : vector<8x32xf32>
    %c0_36 = arith.constant 0 : index
    %c96 = arith.constant 96 : index
    %76 = vector.load %arg2[%c0_36, %c96] : memref<8x256xf32, #tpu.memory_space<vmem>>, vector<8x32xf32>
    %c0_37 = arith.constant 0 : index
    %c96_38 = arith.constant 96 : index
    %77 = vector.load %arg3[%c0_37, %c96_38] : memref<8x256xf32, #tpu.memory_space<vmem>>, vector<8x32xf32>
    %cst_39 = arith.constant dense<0.000000e+00> : vector<8x32xf32>
    %78 = tpu.matmul %76, %3, %cst_39 {dimension_numbers = #tpu.dot_dimension_numbers<[1], [0], [0], [1], [0, 0, 1, 1], [], []>} : vector<8x32xf32>, vector<32x32xf32>, vector<8x32xf32> -> vector<8x32xf32>
    %cst_40 = arith.constant dense<0.000000e+00> : vector<8x32xf32>
    %79 = tpu.matmul %77, %4, %cst_40 {dimension_numbers = #tpu.dot_dimension_numbers<[1], [0], [0], [1], [0, 0, 1, 1], [], []>} : vector<8x32xf32>, vector<32x32xf32>, vector<8x32xf32> -> vector<8x32xf32>
    %80 = arith.addf %78, %79 : vector<8x32xf32>
    %81 = vector.broadcast %5 : vector<1x32xf32> to vector<8x32xf32>
    %82 = arith.addf %80, %81 : vector<8x32xf32>
    %83 = math.tanh %82 : vector<8x32xf32>
    %84 = vector.broadcast %6 : vector<1x32xf32> to vector<8x32xf32>
    %85 = arith.mulf %83, %84 : vector<8x32xf32>
    %cst_41 = arith.constant dense<0.000000e+00> : vector<8xf32>
    %86 = vector.multi_reduction <add>, %85, %cst_41 [1] : vector<8x32xf32> to vector<8xf32>
    %87 = vector.shape_cast %86 : vector<8xf32> to vector<8x1xf32>
    %88 = vector.broadcast %7 : vector<1x1xf32> to vector<8x1xf32>
    %89 = arith.addf %87, %88 : vector<8x1xf32>
    %cst_42 = arith.constant 0.000000e+00 : f32
    %90 = vector.broadcast %cst_42 : f32 to vector<8x1xf32>
    %91 = arith.maximumf %89, %90 : vector<8x1xf32>
    %92 = vector.extract_strided_slice %0 {offsets = [0, 3], sizes = [8, 1], strides = [1, 1]} : vector<8x8xf32> to vector<8x1xf32>
    %cst_43 = arith.constant 1.000000e+00 : f32
    %93 = vector.broadcast %cst_43 : f32 to vector<8x1xf32>
    %94 = arith.subf %93, %92 : vector<8x1xf32>
    %95 = arith.mulf %91, %94 : vector<8x1xf32>
    %96 = vector.broadcast %95 : vector<8x1xf32> to vector<8x32xf32>
    %97 = arith.mulf %96, %76 : vector<8x32xf32>
    %98 = arith.addf %75, %97 : vector<8x32xf32>
    %c0_44 = arith.constant 0 : index
    %c128 = arith.constant 128 : index
    %99 = vector.load %arg2[%c0_44, %c128] : memref<8x256xf32, #tpu.memory_space<vmem>>, vector<8x32xf32>
    %c0_45 = arith.constant 0 : index
    %c128_46 = arith.constant 128 : index
    %100 = vector.load %arg3[%c0_45, %c128_46] : memref<8x256xf32, #tpu.memory_space<vmem>>, vector<8x32xf32>
    %cst_47 = arith.constant dense<0.000000e+00> : vector<8x32xf32>
    %101 = tpu.matmul %99, %3, %cst_47 {dimension_numbers = #tpu.dot_dimension_numbers<[1], [0], [0], [1], [0, 0, 1, 1], [], []>} : vector<8x32xf32>, vector<32x32xf32>, vector<8x32xf32> -> vector<8x32xf32>
    %cst_48 = arith.constant dense<0.000000e+00> : vector<8x32xf32>
    %102 = tpu.matmul %100, %4, %cst_48 {dimension_numbers = #tpu.dot_dimension_numbers<[1], [0], [0], [1], [0, 0, 1, 1], [], []>} : vector<8x32xf32>, vector<32x32xf32>, vector<8x32xf32> -> vector<8x32xf32>
    %103 = arith.addf %101, %102 : vector<8x32xf32>
    %104 = vector.broadcast %5 : vector<1x32xf32> to vector<8x32xf32>
    %105 = arith.addf %103, %104 : vector<8x32xf32>
    %106 = math.tanh %105 : vector<8x32xf32>
    %107 = vector.broadcast %6 : vector<1x32xf32> to vector<8x32xf32>
    %108 = arith.mulf %106, %107 : vector<8x32xf32>
    %cst_49 = arith.constant dense<0.000000e+00> : vector<8xf32>
    %109 = vector.multi_reduction <add>, %108, %cst_49 [1] : vector<8x32xf32> to vector<8xf32>
    %110 = vector.shape_cast %109 : vector<8xf32> to vector<8x1xf32>
    %111 = vector.broadcast %7 : vector<1x1xf32> to vector<8x1xf32>
    %112 = arith.addf %110, %111 : vector<8x1xf32>
    %cst_50 = arith.constant 0.000000e+00 : f32
    %113 = vector.broadcast %cst_50 : f32 to vector<8x1xf32>
    %114 = arith.maximumf %112, %113 : vector<8x1xf32>
    %115 = vector.extract_strided_slice %0 {offsets = [0, 4], sizes = [8, 1], strides = [1, 1]} : vector<8x8xf32> to vector<8x1xf32>
    %cst_51 = arith.constant 1.000000e+00 : f32
    %116 = vector.broadcast %cst_51 : f32 to vector<8x1xf32>
    %117 = arith.subf %116, %115 : vector<8x1xf32>
    %118 = arith.mulf %114, %117 : vector<8x1xf32>
    %119 = vector.broadcast %118 : vector<8x1xf32> to vector<8x32xf32>
    %120 = arith.mulf %119, %99 : vector<8x32xf32>
    %121 = arith.addf %98, %120 : vector<8x32xf32>
    %c0_52 = arith.constant 0 : index
    %c160 = arith.constant 160 : index
    %122 = vector.load %arg2[%c0_52, %c160] : memref<8x256xf32, #tpu.memory_space<vmem>>, vector<8x32xf32>
    %c0_53 = arith.constant 0 : index
    %c160_54 = arith.constant 160 : index
    %123 = vector.load %arg3[%c0_53, %c160_54] : memref<8x256xf32, #tpu.memory_space<vmem>>, vector<8x32xf32>
    %cst_55 = arith.constant dense<0.000000e+00> : vector<8x32xf32>
    %124 = tpu.matmul %122, %3, %cst_55 {dimension_numbers = #tpu.dot_dimension_numbers<[1], [0], [0], [1], [0, 0, 1, 1], [], []>} : vector<8x32xf32>, vector<32x32xf32>, vector<8x32xf32> -> vector<8x32xf32>
    %cst_56 = arith.constant dense<0.000000e+00> : vector<8x32xf32>
    %125 = tpu.matmul %123, %4, %cst_56 {dimension_numbers = #tpu.dot_dimension_numbers<[1], [0], [0], [1], [0, 0, 1, 1], [], []>} : vector<8x32xf32>, vector<32x32xf32>, vector<8x32xf32> -> vector<8x32xf32>
    %126 = arith.addf %124, %125 : vector<8x32xf32>
    %127 = vector.broadcast %5 : vector<1x32xf32> to vector<8x32xf32>
    %128 = arith.addf %126, %127 : vector<8x32xf32>
    %129 = math.tanh %128 : vector<8x32xf32>
    %130 = vector.broadcast %6 : vector<1x32xf32> to vector<8x32xf32>
    %131 = arith.mulf %129, %130 : vector<8x32xf32>
    %cst_57 = arith.constant dense<0.000000e+00> : vector<8xf32>
    %132 = vector.multi_reduction <add>, %131, %cst_57 [1] : vector<8x32xf32> to vector<8xf32>
    %133 = vector.shape_cast %132 : vector<8xf32> to vector<8x1xf32>
    %134 = vector.broadcast %7 : vector<1x1xf32> to vector<8x1xf32>
    %135 = arith.addf %133, %134 : vector<8x1xf32>
    %cst_58 = arith.constant 0.000000e+00 : f32
    %136 = vector.broadcast %cst_58 : f32 to vector<8x1xf32>
    %137 = arith.maximumf %135, %136 : vector<8x1xf32>
    %138 = vector.extract_strided_slice %0 {offsets = [0, 5], sizes = [8, 1], strides = [1, 1]} : vector<8x8xf32> to vector<8x1xf32>
    %cst_59 = arith.constant 1.000000e+00 : f32
    %139 = vector.broadcast %cst_59 : f32 to vector<8x1xf32>
    %140 = arith.subf %139, %138 : vector<8x1xf32>
    %141 = arith.mulf %137, %140 : vector<8x1xf32>
    %142 = vector.broadcast %141 : vector<8x1xf32> to vector<8x32xf32>
    %143 = arith.mulf %142, %122 : vector<8x32xf32>
    %144 = arith.addf %121, %143 : vector<8x32xf32>
    %c0_60 = arith.constant 0 : index
    %c192 = arith.constant 192 : index
    %145 = vector.load %arg2[%c0_60, %c192] : memref<8x256xf32, #tpu.memory_space<vmem>>, vector<8x32xf32>
    %c0_61 = arith.constant 0 : index
    %c192_62 = arith.constant 192 : index
    %146 = vector.load %arg3[%c0_61, %c192_62] : memref<8x256xf32, #tpu.memory_space<vmem>>, vector<8x32xf32>
    %cst_63 = arith.constant dense<0.000000e+00> : vector<8x32xf32>
    %147 = tpu.matmul %145, %3, %cst_63 {dimension_numbers = #tpu.dot_dimension_numbers<[1], [0], [0], [1], [0, 0, 1, 1], [], []>} : vector<8x32xf32>, vector<32x32xf32>, vector<8x32xf32> -> vector<8x32xf32>
    %cst_64 = arith.constant dense<0.000000e+00> : vector<8x32xf32>
    %148 = tpu.matmul %146, %4, %cst_64 {dimension_numbers = #tpu.dot_dimension_numbers<[1], [0], [0], [1], [0, 0, 1, 1], [], []>} : vector<8x32xf32>, vector<32x32xf32>, vector<8x32xf32> -> vector<8x32xf32>
    %149 = arith.addf %147, %148 : vector<8x32xf32>
    %150 = vector.broadcast %5 : vector<1x32xf32> to vector<8x32xf32>
    %151 = arith.addf %149, %150 : vector<8x32xf32>
    %152 = math.tanh %151 : vector<8x32xf32>
    %153 = vector.broadcast %6 : vector<1x32xf32> to vector<8x32xf32>
    %154 = arith.mulf %152, %153 : vector<8x32xf32>
    %cst_65 = arith.constant dense<0.000000e+00> : vector<8xf32>
    %155 = vector.multi_reduction <add>, %154, %cst_65 [1] : vector<8x32xf32> to vector<8xf32>
    %156 = vector.shape_cast %155 : vector<8xf32> to vector<8x1xf32>
    %157 = vector.broadcast %7 : vector<1x1xf32> to vector<8x1xf32>
    %158 = arith.addf %156, %157 : vector<8x1xf32>
    %cst_66 = arith.constant 0.000000e+00 : f32
    %159 = vector.broadcast %cst_66 : f32 to vector<8x1xf32>
    %160 = arith.maximumf %158, %159 : vector<8x1xf32>
    %161 = vector.extract_strided_slice %0 {offsets = [0, 6], sizes = [8, 1], strides = [1, 1]} : vector<8x8xf32> to vector<8x1xf32>
    %cst_67 = arith.constant 1.000000e+00 : f32
    %162 = vector.broadcast %cst_67 : f32 to vector<8x1xf32>
    %163 = arith.subf %162, %161 : vector<8x1xf32>
    %164 = arith.mulf %160, %163 : vector<8x1xf32>
    %165 = vector.broadcast %164 : vector<8x1xf32> to vector<8x32xf32>
    %166 = arith.mulf %165, %145 : vector<8x32xf32>
    %167 = arith.addf %144, %166 : vector<8x32xf32>
    %c0_68 = arith.constant 0 : index
    %c224 = arith.constant 224 : index
    %168 = vector.load %arg2[%c0_68, %c224] : memref<8x256xf32, #tpu.memory_space<vmem>>, vector<8x32xf32>
    %c0_69 = arith.constant 0 : index
    %c224_70 = arith.constant 224 : index
    %169 = vector.load %arg3[%c0_69, %c224_70] : memref<8x256xf32, #tpu.memory_space<vmem>>, vector<8x32xf32>
    %cst_71 = arith.constant dense<0.000000e+00> : vector<8x32xf32>
    %170 = tpu.matmul %168, %3, %cst_71 {dimension_numbers = #tpu.dot_dimension_numbers<[1], [0], [0], [1], [0, 0, 1, 1], [], []>} : vector<8x32xf32>, vector<32x32xf32>, vector<8x32xf32> -> vector<8x32xf32>
    %cst_72 = arith.constant dense<0.000000e+00> : vector<8x32xf32>
    %171 = tpu.matmul %169, %4, %cst_72 {dimension_numbers = #tpu.dot_dimension_numbers<[1], [0], [0], [1], [0, 0, 1, 1], [], []>} : vector<8x32xf32>, vector<32x32xf32>, vector<8x32xf32> -> vector<8x32xf32>
    %172 = arith.addf %170, %171 : vector<8x32xf32>
    %173 = vector.broadcast %5 : vector<1x32xf32> to vector<8x32xf32>
    %174 = arith.addf %172, %173 : vector<8x32xf32>
    %175 = math.tanh %174 : vector<8x32xf32>
    %176 = vector.broadcast %6 : vector<1x32xf32> to vector<8x32xf32>
    %177 = arith.mulf %175, %176 : vector<8x32xf32>
    %cst_73 = arith.constant dense<0.000000e+00> : vector<8xf32>
    %178 = vector.multi_reduction <add>, %177, %cst_73 [1] : vector<8x32xf32> to vector<8xf32>
    %179 = vector.shape_cast %178 : vector<8xf32> to vector<8x1xf32>
    %180 = vector.broadcast %7 : vector<1x1xf32> to vector<8x1xf32>
    %181 = arith.addf %179, %180 : vector<8x1xf32>
    %cst_74 = arith.constant 0.000000e+00 : f32
    %182 = vector.broadcast %cst_74 : f32 to vector<8x1xf32>
    %183 = arith.maximumf %181, %182 : vector<8x1xf32>
    %184 = vector.extract_strided_slice %0 {offsets = [0, 7], sizes = [8, 1], strides = [1, 1]} : vector<8x8xf32> to vector<8x1xf32>
    %cst_75 = arith.constant 1.000000e+00 : f32
    %185 = vector.broadcast %cst_75 : f32 to vector<8x1xf32>
    %186 = arith.subf %185, %184 : vector<8x1xf32>
    %187 = arith.mulf %183, %186 : vector<8x1xf32>
    %188 = vector.broadcast %187 : vector<8x1xf32> to vector<8x32xf32>
    %189 = arith.mulf %188, %168 : vector<8x32xf32>
    %190 = arith.addf %167, %189 : vector<8x32xf32>
    %cst_76 = arith.constant 1.000000e-10 : f32
    %191 = vector.broadcast %cst_76 : f32 to vector<8x1xf32>
    %192 = arith.addf %2, %191 : vector<8x1xf32>
    %193 = tpu.reciprocal %192 : vector<8x1xf32> -> vector<8x1xf32>
    %194 = vector.broadcast %193 : vector<8x1xf32> to vector<8x32xf32>
    %195 = arith.mulf %190, %194 : vector<8x32xf32>
    %c0_77 = arith.constant 0 : index
    %c0_78 = arith.constant 0 : index
    %196 = vector.load %arg9[%c0_77, %c0_78] : memref<8x32xf32, #tpu.memory_space<vmem>>, vector<8x32xf32>
    tpu.vector_store %arg9[%c0_77, %c0_78], %195 {strides = array<i32>} : memref<8x32xf32, #tpu.memory_space<vmem>>, vector<8x32xf32>,
    return
  }
  func.func @transform_0(%arg0: i32) -> (i32, i32) {
    %c0_i32 = arith.constant 0 : i32
    %c0_i32_0 = arith.constant 0 : i32
    return %arg0, %c0_i32 : i32, i32
  }
  func.func @transform_1(%arg0: i32) -> (i32, i32) {
    %c0_i32 = arith.constant 0 : i32
    %c0_i32_0 = arith.constant 0 : i32
    return %arg0, %c0_i32 : i32, i32
  }
  func.func @transform_2(%arg0: i32) -> (i32, i32) {
    %c0_i32 = arith.constant 0 : i32
    %c0_i32_0 = arith.constant 0 : i32
    return %arg0, %c0_i32 : i32, i32
  }
  func.func @transform_3(%arg0: i32) -> (i32, i32) {
    %c0_i32 = arith.constant 0 : i32
    %c0_i32_0 = arith.constant 0 : i32
    %c0_i32_1 = arith.constant 0 : i32
    return %c0_i32, %c0_i32_0 : i32, i32
  }
  func.func @transform_4(%arg0: i32) -> (i32, i32) {
    %c0_i32 = arith.constant 0 : i32
    %c0_i32_0 = arith.constant 0 : i32
    %c0_i32_1 = arith.constant 0 : i32
    return %c0_i32, %c0_i32_0 : i32, i32
  }
  func.func @transform_5(%arg0: i32) -> (i32, i32) {
    %c0_i32 = arith.constant 0 : i32
    %c0_i32_0 = arith.constant 0 : i32
    %c0_i32_1 = arith.constant 0 : i32
    return %c0_i32, %c0_i32_0 : i32, i32
  }
  func.func @transform_6(%arg0: i32) -> (i32, i32) {
    %c0_i32 = arith.constant 0 : i32
    %c0_i32_0 = arith.constant 0 : i32
    %c0_i32_1 = arith.constant 0 : i32
    return %c0_i32, %c0_i32_0 : i32, i32
  }
  func.func @transform_7(%arg0: i32) -> (i32, i32) {
    %c0_i32 = arith.constant 0 : i32
    %c0_i32_0 = arith.constant 0 : i32
    %c0_i32_1 = arith.constant 0 : i32
    return %c0_i32, %c0_i32_0 : i32, i32
  }
  func.func @transform_8(%arg0: i32) -> (i32, i32) {
    %c0_i32 = arith.constant 0 : i32
    %c0_i32_0 = arith.constant 0 : i32
    return %arg0, %c0_i32 : i32, i32
  }
}

</mosaic_0001>

<llo_original>
// kernel: tpu_custom_call.1
$region0: #{tpu_custom_call.1}
  #allocation0 [shape = 'u32[]', space=smem, size = 0x4, offset = 0x4, fixed_abs, tag = 'smem constant byte address 0x4 - core index']
  #allocation1 [shape = 'u32[144,128]{1,0:T(1,128)}', space=vmem, size = 0x12000, scoped, tag = 'internal scratch']
  #allocation2 [shape = 'f32[1,1]{1,0:T(1,128)S(1)}', space=vmem, size = 0x200, scoped, tag = 'scoped memory for tpu_custom_call.1']
  %s0 = inlined_call_operand.vmem [shape: f32[16,8], index: 0, kind: input, shape index: {}]
  %s1 = inlined_call_operand.hbm [shape: f32[16,256], index: 1, kind: input, shape index: {}]
  %s2 = inlined_call_operand.vmem [shape: f32[16,256], index: 2, kind: input, shape index: {}]
  %s3 = inlined_call_operand.hbm [shape: f32[32,32], index: 3, kind: input, shape index: {}]
  %s4 = inlined_call_operand.hbm [shape: f32[32,32], index: 4, kind: input, shape index: {}]
  %s5 = inlined_call_operand.vmem [shape: f32[1,32], index: 5, kind: input, shape index: {}]
  %s6 = inlined_call_operand.vmem [shape: f32[1,32], index: 6, kind: input, shape index: {}]
  %s7 = inlined_call_operand.<no memory space> [shape: f32[1,1], index: 7, kind: input, shape index: {}]
  %s8 = inlined_call_operand.hbm [shape: f32[16,32], index: 8, kind: output, shape index: {}]
  %s9 = sld [smem:[#allocation0]]
  $region77: #{tpu_custom_call.1} parent=0
    _
  %s11 = ssub.s32 1, %s9
  %s12 = scalar_select 0, %s11, %s9
  %v13 = vstv %s7
  %14 = vst [vmem:[#allocation2] sm:$0x1] %v13
  $region1: #{tpu_custom_call.1} parent=0
    #allocation3 [shape = 'u8[16384]{0}', space=vmem, size = 0x4000, scoped, tag = 'input window, operand 1']
    #allocation4 [shape = 's32[2]{0}', space=sflag, size = 0x8, scoped, tag = 'scoped memory for tpu_custom_call.1']
    #allocation5 [shape = 's32[2]{0}', space=sflag, size = 0x8, scoped, tag = 'scoped memory for tpu_custom_call.1']
    #allocation6 [shape = 'u8[16384]{0}', space=vmem, size = 0x4000, scoped, tag = 'input window, operand 3, single buffered']
    #allocation7 [shape = 's32[1]{0}', space=sflag, size = 0x4, scoped, tag = 'scoped memory for tpu_custom_call.1']
    #allocation8 [shape = 'u8[16384]{0}', space=vmem, size = 0x4000, scoped, tag = 'input window, operand 4, single buffered']
    #allocation9 [shape = 'u8[8192]{0}', space=vmem, size = 0x2000, scoped, tag = 'output window, operand 0']
    %15 = vsyncpa [#allocation4], 0
    %s16 = scalar_lea.sflag [#allocation4], 1
    %17 = vsyncpa %s16, 0
    %18 = vsyncpa [#allocation7], 0
    %19 = vsyncpa [#allocation5], 0
    %s20 = scalar_lea.sflag [#allocation5], 1
    %21 = vsyncpa %s20, 0
    loop: start=0, step=1, limit=4
    $region2: #{tpu_custom_call.1} parent=1 // loop_pre_header
      _
    $region3: #{tpu_custom_call.1} parent=1 // loop_header
      %s23 = sphi 0, %s27
      %p24 = scmp.ge.s32.totalorder %s23, 4
      %s33 = sphi 0, %s35
      %s36 = sphi 0, %s33
      %s37 = sphi 0, %s36
      %s53 = sphi 0, %s37
      %s59 = sphi 0, %s61
      %s62 = sphi 0, %s59
      %s63 = sphi 0, %s62
      %s79 = sphi 0, %s63
      %s85 = sphi 0, %s87
      %s88 = sphi 0, %s85
      %s89 = sphi 0, %s88
      %s105 = sphi 0, %s89
      %s109 = sphi 0, %s109
      %s111 = sphi 0, %s109
      %s112 = sphi 0, %s111
      %s126 = sphi 0, %s112
      %s130 = sphi 0, %s130
      %s132 = sphi 0, %s130
      %s133 = sphi 0, %s132
      %s147 = sphi 0, %s133
      %s151 = sphi 0, %s151
      %s153 = sphi 0, %s151
      %s154 = sphi 0, %s153
      %s168 = sphi 0, %s154
      %s172 = sphi 0, %s172
      %s174 = sphi 0, %s172
      %s175 = sphi 0, %s174
      %s189 = sphi 0, %s175
      %s193 = sphi 0, %s193
      %s195 = sphi 0, %s193
      %s196 = sphi 0, %s195
      %s210 = sphi 0, %s196
      %s216 = sphi 0, %s218
      %s219 = sphi 0, %s216
      %s220 = sphi 0, %s219
      %s236 = sphi 0, %s220
    $region4: #{tpu_custom_call.1} parent=1 // loop_header_branch
      %26 = sbr.rel (%p24) target = $region8
    $region5: #{tpu_custom_call.1} parent=1 // loop_body
      %s28 = ssub.s32 %s23, 1
      %s29 = ssub.s32 %s23, 2
      %s30 = sadd.s32 %s23, 1
      %s31 = ssub.s32 %s23, %s30
      %p32 = scmp.eq.s32.totalorder %s31, 0
      %s34 = sadd.s32 %s33, 1
      %s35 = scalar_select %p32, %s33, %s34
      %p38 = pneg %p32
      %p39 = scmp.eq.s32.totalorder %s23, 1
      %p40 = por %p38, %p39
      %p41 = scmp.ne.s32.totalorder %s33, %s36
      %p42 = scmp.eq.s32.totalorder %s23, 0
      %p43 = por %p41, %p42
      %p44 = scmp.ne.s32.totalorder %s33, %s36
      %p45 = scmp.eq.s32.totalorder %s28, 1
      %p46 = por %p44, %p45
      %p47 = scmp.ne.s32.totalorder %s36, %s37
      %p48 = scmp.eq.s32.totalorder %s28, 0
      %p49 = por %p47, %p48
      %p50 = scmp.ne.s32.totalorder %s36, %s37
      %p51 = scmp.eq.s32.totalorder %s29, 1
      %p52 = por %p50, %p51
      %p54 = scmp.ne.s32.totalorder %s37, %s53
      %p55 = scmp.eq.s32.totalorder %s29, 0
      %p56 = por %p54, %p55
      %s57 = ssub.s32 %s23, %s30
      %p58 = scmp.eq.s32.totalorder %s57, 0
      %s60 = sadd.s32 %s59, 1
      %s61 = scalar_select %p58, %s59, %s60
      %p64 = pneg %p58
      %p65 = scmp.eq.s32.totalorder %s23, 1
      %p66 = por %p64, %p65
      %p67 = scmp.ne.s32.totalorder %s59, %s62
      %p68 = scmp.eq.s32.totalorder %s23, 0
      %p69 = por %p67, %p68
      %p70 = scmp.ne.s32.totalorder %s59, %s62
      %p71 = scmp.eq.s32.totalorder %s28, 1
      %p72 = por %p70, %p71
      %p73 = scmp.ne.s32.totalorder %s62, %s63
      %p74 = scmp.eq.s32.totalorder %s28, 0
      %p75 = por %p73, %p74
      %p76 = scmp.ne.s32.totalorder %s62, %s63
      %p77 = scmp.eq.s32.totalorder %s29, 1
      %p78 = por %p76, %p77
      %p80 = scmp.ne.s32.totalorder %s63, %s79
      %p81 = scmp.eq.s32.totalorder %s29, 0
      %p82 = por %p80, %p81
      %s83 = ssub.s32 %s23, %s30
      %p84 = scmp.eq.s32.totalorder %s83, 0
      %s86 = sadd.s32 %s85, 1
      %s87 = scalar_select %p84, %s85, %s86
      %p90 = pneg %p84
      %p91 = scmp.eq.s32.totalorder %s23, 1
      %p92 = por %p90, %p91
      %p93 = scmp.ne.s32.totalorder %s85, %s88
      %p94 = scmp.eq.s32.totalorder %s23, 0
      %p95 = por %p93, %p94
      %p96 = scmp.ne.s32.totalorder %s85, %s88
      %p97 = scmp.eq.s32.totalorder %s28, 1
      %p98 = por %p96, %p97
      %p99 = scmp.ne.s32.totalorder %s88, %s89
      %p100 = scmp.eq.s32.totalorder %s28, 0
      %p101 = por %p99, %p100
      %p102 = scmp.ne.s32.totalorder %s88, %s89
      %p103 = scmp.eq.s32.totalorder %s29, 1
      %p104 = por %p102, %p103
      %p106 = scmp.ne.s32.totalorder %s89, %s105
      %p107 = scmp.eq.s32.totalorder %s29, 0
      %p108 = por %p106, %p107
      %s110 = sadd.s32 %s109, 1
      %p113 = scmp.eq.s32.totalorder %s23, 1
      %p114 = scmp.ne.s32.totalorder %s109, %s111
      %p115 = scmp.eq.s32.totalorder %s23, 0
      %p116 = por %p114, %p115
      %p117 = scmp.ne.s32.totalorder %s109, %s111
      %p118 = scmp.eq.s32.totalorder %s28, 1
      %p119 = por %p117, %p118
      %p120 = scmp.ne.s32.totalorder %s111, %s112
      %p121 = scmp.eq.s32.totalorder %s28, 0
      %p122 = por %p120, %p121
      %p123 = scmp.ne.s32.totalorder %s111, %s112
      %p124 = scmp.eq.s32.totalorder %s29, 1
      %p125 = por %p123, %p124
      %p127 = scmp.ne.s32.totalorder %s112, %s126
      %p128 = scmp.eq.s32.totalorder %s29, 0
      %p129 = por %p127, %p128
      %s131 = sadd.s32 %s130, 1
      %p134 = scmp.eq.s32.totalorder %s23, 1
      %p135 = scmp.ne.s32.totalorder %s130, %s132
      %p136 = scmp.eq.s32.totalorder %s23, 0
      %p137 = por %p135, %p136
      %p138 = scmp.ne.s32.totalorder %s130, %s132
      %p139 = scmp.eq.s32.totalorder %s28, 1
      %p140 = por %p138, %p139
      %p141 = scmp.ne.s32.totalorder %s132, %s133
      %p142 = scmp.eq.s32.totalorder %s28, 0
      %p143 = por %p141, %p142
      %p144 = scmp.ne.s32.totalorder %s132, %s133
      %p145 = scmp.eq.s32.totalorder %s29, 1
      %p146 = por %p144, %p145
      %p148 = scmp.ne.s32.totalorder %s133, %s147
      %p149 = scmp.eq.s32.totalorder %s29, 0
      %p150 = por %p148, %p149
      %s152 = sadd.s32 %s151, 1
      %p155 = scmp.eq.s32.totalorder %s23, 1
      %p156 = scmp.ne.s32.totalorder %s151, %s153
      %p157 = scmp.eq.s32.totalorder %s23, 0
      %p158 = por %p156, %p157
      %p159 = scmp.ne.s32.totalorder %s151, %s153
      %p160 = scmp.eq.s32.totalorder %s28, 1
      %p161 = por %p159, %p160
      %p162 = scmp.ne.s32.totalorder %s153, %s154
      %p163 = scmp.eq.s32.totalorder %s28, 0
      %p164 = por %p162, %p163
      %p165 = scmp.ne.s32.totalorder %s153, %s154
      %p166 = scmp.eq.s32.totalorder %s29, 1
      %p167 = por %p165, %p166
      %p169 = scmp.ne.s32.totalorder %s154, %s168
      %p170 = scmp.eq.s32.totalorder %s29, 0
      %p171 = por %p169, %p170
      %s173 = sadd.s32 %s172, 1
      %p176 = scmp.eq.s32.totalorder %s23, 1
      %p177 = scmp.ne.s32.totalorder %s172, %s174
      %p178 = scmp.eq.s32.totalorder %s23, 0
      %p179 = por %p177, %p178
      %p180 = scmp.ne.s32.totalorder %s172, %s174
      %p181 = scmp.eq.s32.totalorder %s28, 1
      %p182 = por %p180, %p181
      %p183 = scmp.ne.s32.totalorder %s174, %s175
      %p184 = scmp.eq.s32.totalorder %s28, 0
      %p185 = por %p183, %p184
      %p186 = scmp.ne.s32.totalorder %s174, %s175
      %p187 = scmp.eq.s32.totalorder %s29, 1
      %p188 = por %p186, %p187
      %p190 = scmp.ne.s32.totalorder %s175, %s189
      %p191 = scmp.eq.s32.totalorder %s29, 0
      %p192 = por %p190, %p191
      %s194 = sadd.s32 %s193, 1
      %p197 = scmp.eq.s32.totalorder %s23, 1
      %p198 = scmp.ne.s32.totalorder %s193, %s195
      %p199 = scmp.eq.s32.totalorder %s23, 0
      %p200 = por %p198, %p199
      %p201 = scmp.ne.s32.totalorder %s193, %s195
      %p202 = scmp.eq.s32.totalorder %s28, 1
      %p203 = por %p201, %p202
      %p204 = scmp.ne.s32.totalorder %s195, %s196
      %p205 = scmp.eq.s32.totalorder %s28, 0
      %p206 = por %p204, %p205
      %p207 = scmp.ne.s32.totalorder %s195, %s196
      %p208 = scmp.eq.s32.totalorder %s29, 1
      %p209 = por %p207, %p208
      %p211 = scmp.ne.s32.totalorder %s196, %s210
      %p212 = scmp.eq.s32.totalorder %s29, 0
      %p213 = por %p211, %p212
      %s214 = ssub.s32 %s23, %s30
      %p215 = scmp.eq.s32.totalorder %s214, 0
      %s217 = sadd.s32 %s216, 1
      %s218 = scalar_select %p215, %s216, %s217
      %p221 = pneg %p215
      %p222 = scmp.eq.s32.totalorder %s23, 1
      %p223 = por %p221, %p222
      %p224 = scmp.ne.s32.totalorder %s216, %s219
      %p225 = scmp.eq.s32.totalorder %s23, 0
      %p226 = por %p224, %p225
      %p227 = scmp.ne.s32.totalorder %s216, %s219
      %p228 = scmp.eq.s32.totalorder %s28, 1
      %p229 = por %p227, %p228
      %p230 = scmp.ne.s32.totalorder %s219, %s220
      %p231 = scmp.eq.s32.totalorder %s28, 0
      %p232 = por %p230, %p231
      %p233 = scmp.ne.s32.totalorder %s219, %s220
      %p234 = scmp.eq.s32.totalorder %s29, 1
      %p235 = por %p233, %p234
      %p237 = scmp.ne.s32.totalorder %s220, %s236
      %p238 = scmp.eq.s32.totalorder %s29, 0
      %p239 = por %p237, %p238
      %p240 = scmp.le.s32.totalorder 1, %s23
      %p241 = scmp.lt.s32.totalorder %s23, 3
      %p242 = pnand %p240, %p241
      %p243 = pneg %p242
      // Predicated region
      $region9: #{tpu_custom_call.1} parent=5 // pred_check
        _
      $region10: #{tpu_custom_call.1} parent=5 // pred_check_branch
        %245 = sbr.rel (%p242) target = $region12
      $region11: #{tpu_custom_call.1} parent=5 // pred_region
        %s246 = ssub.s32 %s23, 1
        // Predicated region
        $region13: #{tpu_custom_call.1} parent=11 // pred_check
          %p247 = pneg %p122
        $region14: #{tpu_custom_call.1} parent=11 // pred_check_branch
          %249 = sbr.rel (%p247) target = $region16
        $region15: #{tpu_custom_call.1} parent=11 // pred_region
          %s251 = ssub.s32 512, 512
          %252 = vsyncadd [#allocation7], %s251
          %s253 = sshll.u32 [#allocation6], 4
          %s254 = int_to_ptr.vmem [resolvable:$true] %s253
          %259 = dma.hbm_to_vmem [thread:$0]  %s3, 512, %s254, [#allocation7], 128, 128, 8
        $region16: #{tpu_custom_call.1} parent=11 // pred_fallthru
          _
        // Predicated region
        $region17: #{tpu_custom_call.1} parent=11 // pred_check
          %p260 = pneg %p143
        $region18: #{tpu_custom_call.1} parent=11 // pred_check_branch
          %262 = sbr.rel (%p260) target = $region20
        $region19: #{tpu_custom_call.1} parent=11 // pred_region
          %s264 = ssub.s32 512, 512
          %265 = vsyncadd [#allocation7], %s264
          %s266 = sshll.u32 [#allocation8], 4
          %s267 = int_to_ptr.vmem [resolvable:$true] %s266
          %272 = dma.hbm_to_vmem [thread:$0]  %s4, 512, %s267, [#allocation7], 128, 128, 8
        $region20: #{tpu_custom_call.1} parent=11 // pred_fallthru
          _
        // Predicated region
        $region21: #{tpu_custom_call.1} parent=11 // pred_check
          %p273 = pneg %p164
        $region22: #{tpu_custom_call.1} parent=11 // pred_check_branch
          %275 = sbr.rel (%p273) target = $region24
        $region23: #{tpu_custom_call.1} parent=11 // pred_region
          _
        $region24: #{tpu_custom_call.1} parent=11 // pred_fallthru
          _
        // Predicated region
        $region25: #{tpu_custom_call.1} parent=11 // pred_check
          %p276 = pneg %p185
        $region26: #{tpu_custom_call.1} parent=11 // pred_check_branch
          %278 = sbr.rel (%p276) target = $region28
        $region27: #{tpu_custom_call.1} parent=11 // pred_region
          _
        $region28: #{tpu_custom_call.1} parent=11 // pred_fallthru
          _
        // Predicated region
        $region29: #{tpu_custom_call.1} parent=11 // pred_check
          %p279 = pneg %p206
        $region30: #{tpu_custom_call.1} parent=11 // pred_check_branch
          %281 = sbr.rel (%p279) target = $region32
        $region31: #{tpu_custom_call.1} parent=11 // pred_region
          _
        $region32: #{tpu_custom_call.1} parent=11 // pred_fallthru
          _
      $region12: #{tpu_custom_call.1} parent=5 // pred_fallthru
        _
      %p282 = scmp.lt.s32.totalorder %s23, 2
      // Predicated region
      $region33: #{tpu_custom_call.1} parent=5 // pred_check
        %p283 = pneg %p282
      $region34: #{tpu_custom_call.1} parent=5 // pred_check_branch
        %285 = sbr.rel (%p283) target = $region36
      $region35: #{tpu_custom_call.1} parent=5 // pred_region
        // Predicated region
        $region37: #{tpu_custom_call.1} parent=35 // pred_check
          %p286 = pneg %p43
        $region38: #{tpu_custom_call.1} parent=35 // pred_check_branch
          %288 = sbr.rel (%p286) target = $region40
        $region39: #{tpu_custom_call.1} parent=35 // pred_region
          %p289 = scmp.lt.s32.totalorder %s23, 1
          %s290 = scalar_select %p289, %s23, 1
          %s291 = smul.addr %s290, 8
          %s292 = scalar_lea.vmem %s0, %s291
        $region40: #{tpu_custom_call.1} parent=35 // pred_fallthru
          _
        // Predicated region
        $region41: #{tpu_custom_call.1} parent=35 // pred_check
          %p293 = pneg %p69
        $region42: #{tpu_custom_call.1} parent=35 // pred_check_branch
          %295 = sbr.rel (%p293) target = $region44
        $region43: #{tpu_custom_call.1} parent=35 // pred_region
          %s296 = sand.u32 %s59, 1
          %s297 = scalar_lea.sflag [#allocation4], %s296
          %s298 = sand.u32 %s59, 1
          %s299 = smul.addr %s298, 16
          %s300 = scalar_lea.vmem [#allocation3], %s299
          %s302 = ssub.s32 256, 256
          %303 = vsyncadd %s297, %s302
          %s304 = smul.addr %s23, 2
          %s305 = smul.addr %s304, 128
          %s306 = scalar_lea.hbm %s1, %s305
          %s308 = sshll.u32 %s300, 4
          %s309 = int_to_ptr.vmem [resolvable:$true] %s308
          %311 = dma.hbm_to_vmem [thread:$0]  %s306, 256, %s309, %s297
        $region44: #{tpu_custom_call.1} parent=35 // pred_fallthru
          _
        // Predicated region
        $region45: #{tpu_custom_call.1} parent=35 // pred_check
          %p312 = pneg %p95
        $region46: #{tpu_custom_call.1} parent=35 // pred_check_branch
          %314 = sbr.rel (%p312) target = $region48
        $region47: #{tpu_custom_call.1} parent=35 // pred_region
          %p315 = scmp.lt.s32.totalorder %s23, 1
          %s316 = scalar_select %p315, %s23, 1
          %s317 = smul.addr %s316, 2
          %s318 = smul.addr %s317, 8
          %s319 = scalar_lea.vmem %s2, %s318
        $region48: #{tpu_custom_call.1} parent=35 // pred_fallthru
          _
      $region36: #{tpu_custom_call.1} parent=5 // pred_fallthru
        _
      %p320 = scmp.le.s32.totalorder 1, %s23
      %p321 = scmp.lt.s32.totalorder %s23, 3
      %p322 = pnand %p320, %p321
      %p323 = pneg %p322
      // Predicated region
      $region49: #{tpu_custom_call.1} parent=5 // pred_check
        _
      $region50: #{tpu_custom_call.1} parent=5 // pred_check_branch
        %325 = sbr.rel (%p322) target = $region52
      $region51: #{tpu_custom_call.1} parent=5 // pred_region
        %s326 = ssub.s32 %s23, 1
        %s327 = sand.u32 %s62, 1
        %s328 = scalar_lea.sflag [#allocation4], %s327
        %s329 = sand.u32 %s62, 1
        %s330 = smul.addr %s329, 16
        %s331 = scalar_lea.vmem [#allocation3], %s330
        // Predicated region
        $region53: #{tpu_custom_call.1} parent=51 // pred_check
          %p332 = pneg %p75
        $region54: #{tpu_custom_call.1} parent=51 // pred_check_branch
          %334 = sbr.rel (%p332) target = $region56
        $region55: #{tpu_custom_call.1} parent=51 // pred_region
          %335 = dma.done %s328, 256
        $region56: #{tpu_custom_call.1} parent=51 // pred_fallthru
          _
        // Predicated region
        $region57: #{tpu_custom_call.1} parent=51 // pred_check
          %p336 = pneg %p122
        $region58: #{tpu_custom_call.1} parent=51 // pred_check_branch
          %338 = sbr.rel (%p336) target = $region60
        $region59: #{tpu_custom_call.1} parent=51 // pred_region
          %339 = dma.done [#allocation7], 512
        $region60: #{tpu_custom_call.1} parent=51 // pred_fallthru
          _
        // Predicated region
        $region61: #{tpu_custom_call.1} parent=51 // pred_check
          %p340 = pneg %p143
        $region62: #{tpu_custom_call.1} parent=51 // pred_check_branch
          %342 = sbr.rel (%p340) target = $region64
        $region63: #{tpu_custom_call.1} parent=51 // pred_region
          %343 = dma.done [#allocation7], 512
        $region64: #{tpu_custom_call.1} parent=51 // pred_fallthru
          _
        %p344 = scmp.lt.s32.totalorder %s28, 1
        %s345 = scalar_select %p344, %s28, 1
        %s346 = smul.addr %s345, 8
        %s347 = scalar_lea.vmem %s0, %s346
        %p348 = pneg %p49
        %p349 = pneg %p46
        %s350 = sand.u32 %s62, 1
        %s351 = scalar_lea.sflag [#allocation4], %s350
        %s352 = sand.u32 %s62, 1
        %s353 = smul.addr %s352, 16
        %s354 = scalar_lea.vmem [#allocation3], %s353
        %p355 = pneg %p75
        %p356 = pneg %p72
        %p357 = scmp.lt.s32.totalorder %s28, 1
        %s358 = scalar_select %p357, %s28, 1
        %s359 = smul.addr %s358, 2
        %s360 = smul.addr %s359, 8
        %s361 = scalar_lea.vmem %s2, %s360
        %p362 = pneg %p101
        %p363 = pneg %p98
        %p364 = pneg %p122
        %p365 = pneg %p119
        %p366 = pneg %p143
        %p367 = pneg %p140
        %p368 = pneg %p164
        %p369 = pneg %p161
        %p370 = pneg %p185
        %p371 = pneg %p182
        %p372 = pneg %p206
        %p373 = pneg %p203
        %p374 = pneg %p232
        %p375 = pneg %p229
        %s376 = sand.u32 %s219, 1
        %s377 = scalar_lea.sflag [#allocation5], %s376
        %s378 = sand.u32 %s219, 1
        %s379 = smul.addr %s378, 8
        %s380 = scalar_lea.vmem [#allocation9], %s379
        %p381 = scmp.lt.s32.totalorder %s28, 1
        %s382 = scalar_select %p381, %s28, 1
        %s383 = smul.addr %s382, 8
        %s384 = scalar_lea.vmem %s0, %s383
        %p385 = scmp.lt.s32.totalorder %s28, 1
        %s386 = scalar_select %p385, %s28, 1
        %s387 = smul.addr %s386, 2
        %s388 = smul.addr %s387, 8
        %s389 = scalar_lea.vmem %s2, %s388
        %v390 = vld [vmem:[%s384] sm:$0xff]
        %vm391 = vcmask 64512
        %v392 = vsel %vm391, %v390, 0.0
        %393 = vadd.xlane.f32.xlu0 %v392
        %v394 = vpop.xlane.xlu0 %393
        %v395 = vld [vmem:[#allocation6] sm:$0xff]
        %v396 = vld [vmem:[#allocation6 + $0x8] sm:$0xff]
        %v397 = vld [vmem:[#allocation6 + $0x10] sm:$0xff]
        %v398 = vld [vmem:[#allocation6 + $0x18] sm:$0xff]
        %v399 = vld [vmem:[#allocation8] sm:$0xff]
        %v400 = vld [vmem:[#allocation8 + $0x8] sm:$0xff]
        %v401 = vld [vmem:[#allocation8 + $0x10] sm:$0xff]
        %v402 = vld [vmem:[#allocation8 + $0x18] sm:$0xff]
        %v403 = vld [vmem:[%s5] sm:$0x1]
        %v404 = vld [vmem:[%s6] sm:$0x1]
        %v405 = vld [vmem:[#allocation2] sm:$0x1]
        %v406 = vld [vmem:[%s331] sm:$0xff]
        %v407 = vld [vmem:[%s389] sm:$0xff]
        %vm408 = vcmask 261120
        %v410 = vsel %vm408, %v407, 0
        %412 = vmatprep.subr.mxu0 0.0
        %413 = vmatpush1.msra.mxu0 %v399
        %414 = vmatprep.subr.mxu0 0.0
        %415 = vmatpush1.msra.mxu0 %v400
        %416 = vmatprep.subr.mxu0 0.0
        %417 = vmatpush1.msra.mxu0 %v401
        %418 = vmatprep.subr.mxu0 0.0
        %419 = vmatpush1.msra.mxu0 %v402
        %420 = vmatprep.subr.mxu0 0.0
        %421 = vmatpush1.msra.mxu0 0.0
        %422 = vmatprep.subr.mxu0 0.0
        %423 = vmatpush1.msra.mxu0 0.0
        %424 = vmatprep.subr.mxu0 0.0
        %425 = vmatpush1.msra.mxu0 0.0
        %426 = vmatprep.subr.mxu0 0.0
        %427 = vmatpush1.msra.mxu0 0.0
        %428 = vmatprep.subr.mxu0 0.0
        %429 = vmatpush1.msra.mxu0 0.0
        %430 = vmatprep.subr.mxu0 0.0
        %431 = vmatpush1.msra.mxu0 0.0
        %432 = vmatprep.subr.mxu0 0.0
        %433 = vmatpush1.msra.mxu0 0.0
        %434 = vmatprep.subr.mxu0 0.0
        %435 = vmatpush1.msra.mxu0 0.0
        %436 = vmatprep.subr.mxu0 0.0
        %437 = vmatpush1.msra.mxu0 0.0
        %438 = vmatprep.subr.mxu0 0.0
        %439 = vmatpush1.msra.mxu0 0.0
        %440 = vmatprep.subr.mxu0 0.0
        %441 = vmatpush1.msra.mxu0 0.0
        %442 = vmatprep.subr.mxu0 0.0
        %443 = vmatpush1.msra.mxu0 0.0
        %444 = vmatprep.subr.mxu0 0.0
        %445 = vmatpush1.msra.mxu0 0.0
        %446 = vmatprep.subr.mxu0 0.0
        %447 = vmatpush1.msra.mxu0 0.0
        %448 = vmatprep.subr.mxu0 0.0
        %449 = vmatpush1.msra.mxu0 0.0
        %450 = vmatprep.subr.mxu0 0.0
        %451 = vmatpush1.msra.mxu0 0.0
        %452 = vmatprep.subr.mxu0 0.0
        %453 = vmatpush1.msra.mxu0 0.0
        %454 = vmatprep.subr.mxu0 0.0
        %455 = vmatpush1.msra.mxu0 0.0
        %456 = vmatprep.subr.mxu0 0.0
        %457 = vmatpush1.msra.mxu0 0.0
        %458 = vmatprep.subr.mxu0 0.0
        %459 = vmatpush1.msra.mxu0 0.0
        %460 = vmatprep.subr.mxu0 0.0
        %461 = vmatpush1.msra.mxu0 0.0
        %462 = vmatprep.subr.mxu0 0.0
        %463 = vmatpush1.msra.mxu0 0.0
        %464 = vmatprep.subr.mxu0 0.0
        %465 = vmatpush1.msra.mxu0 0.0
        %466 = vmatprep.subr.mxu0 0.0
        %467 = vmatpush1.msra.mxu0 0.0
        %468 = vmatprep.subr.mxu0 0.0
        %469 = vmatpush1.msra.mxu0 0.0
        %470 = vmatprep.subr.mxu0 0.0
        %471 = vmatpush1.msra.mxu0 0.0
        %472 = vmatprep.subr.mxu0 0.0
        %473 = vmatpush1.msra.mxu0 0.0
        %474 = vmatprep.subr.mxu0 0.0
        %475 = vmatpush1.msra.mxu0 0.0
        %476 = vmatprep.mubr.f32.mxu0 0.0
        %477 = vmatmul.mubr.f32.gmra.mrb[0].mxu0 %v410
        %v478 = vpop.f32.mrb[0].mxu0
        %v479 = vadd.f32 0.0, %v478
        %v480 = vpop.f32.mrb[0].mxu0
        %481 = vdwg.mxu0
        %v483 = vsel %vm408, %v406, 0
        %485 = vmatprep.subr.mxu0 0.0
        %486 = vmatpush1.msra.mxu0 %v395
        %487 = vmatprep.subr.mxu0 0.0
        %488 = vmatpush1.msra.mxu0 %v396
        %489 = vmatprep.subr.mxu0 0.0
        %490 = vmatpush1.msra.mxu0 %v397
        %491 = vmatprep.subr.mxu0 0.0
        %492 = vmatpush1.msra.mxu0 %v398
        %493 = vmatprep.subr.mxu0 0.0
        %494 = vmatpush1.msra.mxu0 0.0
        %495 = vmatprep.subr.mxu0 0.0
        %496 = vmatpush1.msra.mxu0 0.0
        %497 = vmatprep.subr.mxu0 0.0
        %498 = vmatpush1.msra.mxu0 0.0
        %499 = vmatprep.subr.mxu0 0.0
        %500 = vmatpush1.msra.mxu0 0.0
        %501 = vmatprep.subr.mxu0 0.0
        %502 = vmatpush1.msra.mxu0 0.0
        %503 = vmatprep.subr.mxu0 0.0
        %504 = vmatpush1.msra.mxu0 0.0
        %505 = vmatprep.subr.mxu0 0.0
        %506 = vmatpush1.msra.mxu0 0.0
        %507 = vmatprep.subr.mxu0 0.0
        %508 = vmatpush1.msra.mxu0 0.0
        %509 = vmatprep.subr.mxu0 0.0
        %510 = vmatpush1.msra.mxu0 0.0
        %511 = vmatprep.subr.mxu0 0.0
        %512 = vmatpush1.msra.mxu0 0.0
        %513 = vmatprep.subr.mxu0 0.0
        %514 = vmatpush1.msra.mxu0 0.0
        %515 = vmatprep.subr.mxu0 0.0
        %516 = vmatpush1.msra.mxu0 0.0
        %517 = vmatprep.subr.mxu0 0.0
        %518 = vmatpush1.msra.mxu0 0.0
        %519 = vmatprep.subr.mxu0 0.0
        %520 = vmatpush1.msra.mxu0 0.0
        %521 = vmatprep.subr.mxu0 0.0
        %522 = vmatpush1.msra.mxu0 0.0
        %523 = vmatprep.subr.mxu0 0.0
        %524 = vmatpush1.msra.mxu0 0.0
        %525 = vmatprep.subr.mxu0 0.0
        %526 = vmatpush1.msra.mxu0 0.0
        %527 = vmatprep.subr.mxu0 0.0
        %528 = vmatpush1.msra.mxu0 0.0
        %529 = vmatprep.subr.mxu0 0.0
        %530 = vmatpush1.msra.mxu0 0.0
        %531 = vmatprep.subr.mxu0 0.0
        %532 = vmatpush1.msra.mxu0 0.0
        %533 = vmatprep.subr.mxu0 0.0
        %534 = vmatpush1.msra.mxu0 0.0
        %535 = vmatprep.subr.mxu0 0.0
        %536 = vmatpush1.msra.mxu0 0.0
        %537 = vmatprep.subr.mxu0 0.0
        %538 = vmatpush1.msra.mxu0 0.0
        %539 = vmatprep.subr.mxu0 0.0
        %540 = vmatpush1.msra.mxu0 0.0
        %541 = vmatprep.subr.mxu0 0.0
        %542 = vmatpush1.msra.mxu0 0.0
        %543 = vmatprep.subr.mxu0 0.0
        %544 = vmatpush1.msra.mxu0 0.0
        %545 = vmatprep.subr.mxu0 0.0
        %546 = vmatpush1.msra.mxu0 0.0
        %547 = vmatprep.subr.mxu0 0.0
        %548 = vmatpush1.msra.mxu0 0.0
        %549 = vmatprep.mubr.f32.mxu0 0.0
        %550 = vmatmul.mubr.f32.gmra.mrb[0].mxu0 %v483
        %v551 = vpop.f32.mrb[0].mxu0
        %v552 = vadd.f32 %v479, %v551
        %v553 = vpop.f32.mrb[0].mxu0
        %554 = vdwg.mxu0
        %v556 = vlaneseq
        %v557 = vshrl.u32 %v556, 7
        %v558 = vsub.s32 0, %v557
        %v559 = vrot.slane %v403, %v558
        %v561 = vadd.f32 %v552, %v559
        %v562 = vtanh.pop %v561
        %v564 = vlaneseq
        %v565 = vshrl.u32 %v564, 7
        %v566 = vsub.s32 0, %v565
        %v567 = vrot.slane %v404, %v566
        %v569 = vmul.f32 %v562, %v567
        %v570 = vsel %vm408, %v569, 0.0
        %571 = vadd.xlane.f32.xlu0 %v570
        %v572 = vpop.xlane.xlu0 %571
        %v574 = vlaneseq
        %v575 = vshrl.u32 %v574, 7
        %v576 = vsub.s32 0, %v575
        %v577 = vrot.slane %v405, %v576
        %v579 = vadd.f32 %v572, %v577
        %v580 = vmax.f32 %v579, 0.0
        %v581 = vsub.f32 1.0, %v390
        %v582 = vmul.f32 %v580, %v581
        %584 = vset.pattern.permute.xlu0 0
        %585 = vperm.xlu0 %584, %v582
        %v586 = vpop.permute.xlu0 %585
        %v588 = vmul.f32 %v586, %v406
        %589 = vrot.lane.b32.xlu0 %v407, 96
        %v590 = vpop.permute.xlu0 %589
        %v591 = vsel %vm408, %v590, 0
        %593 = vmatprep.subr.mxu0 0.0
        %594 = vmatpush1.msra.mxu0 %v399
        %595 = vmatprep.subr.mxu0 0.0
        %596 = vmatpush1.msra.mxu0 %v400
        %597 = vmatprep.subr.mxu0 0.0
        %598 = vmatpush1.msra.mxu0 %v401
        %599 = vmatprep.subr.mxu0 0.0
        %600 = vmatpush1.msra.mxu0 %v402
        %601 = vmatprep.subr.mxu0 0.0
        %602 = vmatpush1.msra.mxu0 0.0
        %603 = vmatprep.subr.mxu0 0.0
        %604 = vmatpush1.msra.mxu0 0.0
        %605 = vmatprep.subr.mxu0 0.0
        %606 = vmatpush1.msra.mxu0 0.0
        %607 = vmatprep.subr.mxu0 0.0
        %608 = vmatpush1.msra.mxu0 0.0
        %609 = vmatprep.subr.mxu0 0.0
        %610 = vmatpush1.msra.mxu0 0.0
        %611 = vmatprep.subr.mxu0 0.0
        %612 = vmatpush1.msra.mxu0 0.0
        %613 = vmatprep.subr.mxu0 0.0
        %614 = vmatpush1.msra.mxu0 0.0
        %615 = vmatprep.subr.mxu0 0.0
        %616 = vmatpush1.msra.mxu0 0.0
        %617 = vmatprep.subr.mxu0 0.0
        %618 = vmatpush1.msra.mxu0 0.0
        %619 = vmatprep.subr.mxu0 0.0
        %620 = vmatpush1.msra.mxu0 0.0
        %621 = vmatprep.subr.mxu0 0.0
        %622 = vmatpush1.msra.mxu0 0.0
        %623 = vmatprep.subr.mxu0 0.0
        %624 = vmatpush1.msra.mxu0 0.0
        %625 = vmatprep.subr.mxu0 0.0
        %626 = vmatpush1.msra.mxu0 0.0
        %627 = vmatprep.subr.mxu0 0.0
        %628 = vmatpush1.msra.mxu0 0.0
        %629 = vmatprep.subr.mxu0 0.0
        %630 = vmatpush1.msra.mxu0 0.0
        %631 = vmatprep.subr.mxu0 0.0
        %632 = vmatpush1.msra.mxu0 0.0
        %633 = vmatprep.subr.mxu0 0.0
        %634 = vmatpush1.msra.mxu0 0.0
        %635 = vmatprep.subr.mxu0 0.0
        %636 = vmatpush1.msra.mxu0 0.0
        %637 = vmatprep.subr.mxu0 0.0
        %638 = vmatpush1.msra.mxu0 0.0
        %639 = vmatprep.subr.mxu0 0.0
        %640 = vmatpush1.msra.mxu0 0.0
        %641 = vmatprep.subr.mxu0 0.0
        %642 = vmatpush1.msra.mxu0 0.0
        %643 = vmatprep.subr.mxu0 0.0
        %644 = vmatpush1.msra.mxu0 0.0
        %645 = vmatprep.subr.mxu0 0.0
        %646 = vmatpush1.msra.mxu0 0.0
        %647 = vmatprep.subr.mxu0 0.0
        %648 = vmatpush1.msra.mxu0 0.0
        %649 = vmatprep.subr.mxu0 0.0
        %650 = vmatpush1.msra.mxu0 0.0
        %651 = vmatprep.subr.mxu0 0.0
        %652 = vmatpush1.msra.mxu0 0.0
        %653 = vmatprep.subr.mxu0 0.0
        %654 = vmatpush1.msra.mxu0 0.0
        %655 = vmatprep.subr.mxu0 0.0
        %656 = vmatpush1.msra.mxu0 0.0
        %657 = vmatprep.mubr.f32.mxu0 0.0
        %658 = vmatmul.mubr.f32.gmra.mrb[0].mxu0 %v591
        %v659 = vpop.f32.mrb[0].mxu0
        %v660 = vadd.f32 0.0, %v659
        %v661 = vpop.f32.mrb[0].mxu0
        %662 = vdwg.mxu0
        %663 = vrot.lane.b32.xlu0 %v406, 96
        %v664 = vpop.permute.xlu0 %663
        %v665 = vsel %vm408, %v664, 0
        %667 = vmatprep.subr.mxu0 0.0
        %668 = vmatpush1.msra.mxu0 %v395
        %669 = vmatprep.subr.mxu0 0.0
        %670 = vmatpush1.msra.mxu0 %v396
        %671 = vmatprep.subr.mxu0 0.0
        %672 = vmatpush1.msra.mxu0 %v397
        %673 = vmatprep.subr.mxu0 0.0
        %674 = vmatpush1.msra.mxu0 %v398
        %675 = vmatprep.subr.mxu0 0.0
        %676 = vmatpush1.msra.mxu0 0.0
        %677 = vmatprep.subr.mxu0 0.0
        %678 = vmatpush1.msra.mxu0 0.0
        %679 = vmatprep.subr.mxu0 0.0
        %680 = vmatpush1.msra.mxu0 0.0
        %681 = vmatprep.subr.mxu0 0.0
        %682 = vmatpush1.msra.mxu0 0.0
        %683 = vmatprep.subr.mxu0 0.0
        %684 = vmatpush1.msra.mxu0 0.0
        %685 = vmatprep.subr.mxu0 0.0
        %686 = vmatpush1.msra.mxu0 0.0
        %687 = vmatprep.subr.mxu0 0.0
        %688 = vmatpush1.msra.mxu0 0.0
        %689 = vmatprep.subr.mxu0 0.0
        %690 = vmatpush1.msra.mxu0 0.0
        %691 = vmatprep.subr.mxu0 0.0
        %692 = vmatpush1.msra.mxu0 0.0
        %693 = vmatprep.subr.mxu0 0.0
        %694 = vmatpush1.msra.mxu0 0.0
        %695 = vmatprep.subr.mxu0 0.0
        %696 = vmatpush1.msra.mxu0 0.0
        %697 = vmatprep.subr.mxu0 0.0
        %698 = vmatpush1.msra.mxu0 0.0
        %699 = vmatprep.subr.mxu0 0.0
        %700 = vmatpush1.msra.mxu0 0.0
        %701 = vmatprep.subr.mxu0 0.0
        %702 = vmatpush1.msra.mxu0 0.0
        %703 = vmatprep.subr.mxu0 0.0
        %704 = vmatpush1.msra.mxu0 0.0
        %705 = vmatprep.subr.mxu0 0.0
        %706 = vmatpush1.msra.mxu0 0.0
        %707 = vmatprep.subr.mxu0 0.0
        %708 = vmatpush1.msra.mxu0 0.0
        %709 = vmatprep.subr.mxu0 0.0
        %710 = vmatpush1.msra.mxu0 0.0
        %711 = vmatprep.subr.mxu0 0.0
        %712 = vmatpush1.msra.mxu0 0.0
        %713 = vmatprep.subr.mxu0 0.0
        %714 = vmatpush1.msra.mxu0 0.0
        %715 = vmatprep.subr.mxu0 0.0
        %716 = vmatpush1.msra.mxu0 0.0
        %717 = vmatprep.subr.mxu0 0.0
        %718 = vmatpush1.msra.mxu0 0.0
        %719 = vmatprep.subr.mxu0 0.0
        %720 = vmatpush1.msra.mxu0 0.0
        %721 = vmatprep.subr.mxu0 0.0
        %722 = vmatpush1.msra.mxu0 0.0
        %723 = vmatprep.subr.mxu0 0.0
        %724 = vmatpush1.msra.mxu0 0.0
        %725 = vmatprep.subr.mxu0 0.0
        %726 = vmatpush1.msra.mxu0 0.0
        %727 = vmatprep.subr.mxu0 0.0
        %728 = vmatpush1.msra.mxu0 0.0
        %729 = vmatprep.subr.mxu0 0.0
        %730 = vmatpush1.msra.mxu0 0.0
        %731 = vmatprep.mubr.f32.mxu0 0.0
        %732 = vmatmul.mubr.f32.gmra.mrb[0].mxu0 %v665
        %v733 = vpop.f32.mrb[0].mxu0
        %v734 = vadd.f32 %v660, %v733
        %v735 = vpop.f32.mrb[0].mxu0
        %736 = vdwg.mxu0
        %v737 = vadd.f32 %v734, %v559
        %v738 = vtanh.pop %v737
        %v739 = vmul.f32 %v738, %v567
        %v740 = vsel %vm408, %v739, 0.0
        %741 = vadd.xlane.f32.xlu0 %v740
        %v742 = vpop.xlane.xlu0 %741
        %v743 = vadd.f32 %v742, %v577
        %v744 = vmax.f32 %v743, 0.0
        %746 = vrot.lane.b32.xlu0 %v581, 127
        %v747 = vpop.permute.xlu0 %746
        %v749 = vmul.f32 %v744, %v747
        %751 = vset.pattern.permute.xlu0 0
        %752 = vperm.xlu0 %751, %v749
        %v753 = vpop.permute.xlu0 %752
        %v755 = vmul.f32 %v753, %v406
        %757 = vrot.lane.b32.xlu0 %v755, 96
        %v758 = vpop.permute.xlu0 %757
        %v760 = vadd.f32 %v588, %v758
        %761 = vrot.lane.b32.xlu0 %v407, 64
        %v762 = vpop.permute.xlu0 %761
        %v763 = vsel %vm408, %v762, 0
        %765 = vmatprep.subr.mxu0 0.0
        %766 = vmatpush1.msra.mxu0 %v399
        %767 = vmatprep.subr.mxu0 0.0
        %768 = vmatpush1.msra.mxu0 %v400
        %769 = vmatprep.subr.mxu0 0.0
        %770 = vmatpush1.msra.mxu0 %v401
        %771 = vmatprep.subr.mxu0 0.0
        %772 = vmatpush1.msra.mxu0 %v402
        %773 = vmatprep.subr.mxu0 0.0
        %774 = vmatpush1.msra.mxu0 0.0
        %775 = vmatprep.subr.mxu0 0.0
        %776 = vmatpush1.msra.mxu0 0.0
        %777 = vmatprep.subr.mxu0 0.0
        %778 = vmatpush1.msra.mxu0 0.0
        %779 = vmatprep.subr.mxu0 0.0
        %780 = vmatpush1.msra.mxu0 0.0
        %781 = vmatprep.subr.mxu0 0.0
        %782 = vmatpush1.msra.mxu0 0.0
        %783 = vmatprep.subr.mxu0 0.0
        %784 = vmatpush1.msra.mxu0 0.0
        %785 = vmatprep.subr.mxu0 0.0
        %786 = vmatpush1.msra.mxu0 0.0
        %787 = vmatprep.subr.mxu0 0.0
        %788 = vmatpush1.msra.mxu0 0.0
        %789 = vmatprep.subr.mxu0 0.0
        %790 = vmatpush1.msra.mxu0 0.0
        %791 = vmatprep.subr.mxu0 0.0
        %792 = vmatpush1.msra.mxu0 0.0
        %793 = vmatprep.subr.mxu0 0.0
        %794 = vmatpush1.msra.mxu0 0.0
        %795 = vmatprep.subr.mxu0 0.0
        %796 = vmatpush1.msra.mxu0 0.0
        %797 = vmatprep.subr.mxu0 0.0
        %798 = vmatpush1.msra.mxu0 0.0
        %799 = vmatprep.subr.mxu0 0.0
        %800 = vmatpush1.msra.mxu0 0.0
        %801 = vmatprep.subr.mxu0 0.0
        %802 = vmatpush1.msra.mxu0 0.0
        %803 = vmatprep.subr.mxu0 0.0
        %804 = vmatpush1.msra.mxu0 0.0
        %805 = vmatprep.subr.mxu0 0.0
        %806 = vmatpush1.msra.mxu0 0.0
        %807 = vmatprep.subr.mxu0 0.0
        %808 = vmatpush1.msra.mxu0 0.0
        %809 = vmatprep.subr.mxu0 0.0
        %810 = vmatpush1.msra.mxu0 0.0
        %811 = vmatprep.subr.mxu0 0.0
        %812 = vmatpush1.msra.mxu0 0.0
        %813 = vmatprep.subr.mxu0 0.0
        %814 = vmatpush1.msra.mxu0 0.0
        %815 = vmatprep.subr.mxu0 0.0
        %816 = vmatpush1.msra.mxu0 0.0
        %817 = vmatprep.subr.mxu0 0.0
        %818 = vmatpush1.msra.mxu0 0.0
        %819 = vmatprep.subr.mxu0 0.0
        %820 = vmatpush1.msra.mxu0 0.0
        %821 = vmatprep.subr.mxu0 0.0
        %822 = vmatpush1.msra.mxu0 0.0
        %823 = vmatprep.subr.mxu0 0.0
        %824 = vmatpush1.msra.mxu0 0.0
        %825 = vmatprep.subr.mxu0 0.0
        %826 = vmatpush1.msra.mxu0 0.0
        %827 = vmatprep.subr.mxu0 0.0
        %828 = vmatpush1.msra.mxu0 0.0
        %829 = vmatprep.mubr.f32.mxu0 0.0
        %830 = vmatmul.mubr.f32.gmra.mrb[0].mxu0 %v763
        %v831 = vpop.f32.mrb[0].mxu0
        %v832 = vadd.f32 0.0, %v831
        %v833 = vpop.f32.mrb[0].mxu0
        %834 = vdwg.mxu0
        %835 = vrot.lane.b32.xlu0 %v406, 64
        %v836 = vpop.permute.xlu0 %835
        %v837 = vsel %vm408, %v836, 0
        %839 = vmatprep.subr.mxu0 0.0
        %840 = vmatpush1.msra.mxu0 %v395
        %841 = vmatprep.subr.mxu0 0.0
        %842 = vmatpush1.msra.mxu0 %v396
        %843 = vmatprep.subr.mxu0 0.0
        %844 = vmatpush1.msra.mxu0 %v397
        %845 = vmatprep.subr.mxu0 0.0
        %846 = vmatpush1.msra.mxu0 %v398
        %847 = vmatprep.subr.mxu0 0.0
        %848 = vmatpush1.msra.mxu0 0.0
        %849 = vmatprep.subr.mxu0 0.0
        %850 = vmatpush1.msra.mxu0 0.0
        %851 = vmatprep.subr.mxu0 0.0
        %852 = vmatpush1.msra.mxu0 0.0
        %853 = vmatprep.subr.mxu0 0.0
        %854 = vmatpush1.msra.mxu0 0.0
        %855 = vmatprep.subr.mxu0 0.0
        %856 = vmatpush1.msra.mxu0 0.0
        %857 = vmatprep.subr.mxu0 0.0
        %858 = vmatpush1.msra.mxu0 0.0
        %859 = vmatprep.subr.mxu0 0.0
        %860 = vmatpush1.msra.mxu0 0.0
        %861 = vmatprep.subr.mxu0 0.0
        %862 = vmatpush1.msra.mxu0 0.0
        %863 = vmatprep.subr.mxu0 0.0
        %864 = vmatpush1.msra.mxu0 0.0
        %865 = vmatprep.subr.mxu0 0.0
        %866 = vmatpush1.msra.mxu0 0.0
        %867 = vmatprep.subr.mxu0 0.0
        %868 = vmatpush1.msra.mxu0 0.0
        %869 = vmatprep.subr.mxu0 0.0
        %870 = vmatpush1.msra.mxu0 0.0
        %871 = vmatprep.subr.mxu0 0.0
        %872 = vmatpush1.msra.mxu0 0.0
        %873 = vmatprep.subr.mxu0 0.0
        %874 = vmatpush1.msra.mxu0 0.0
        %875 = vmatprep.subr.mxu0 0.0
        %876 = vmatpush1.msra.mxu0 0.0
        %877 = vmatprep.subr.mxu0 0.0
        %878 = vmatpush1.msra.mxu0 0.0
        %879 = vmatprep.subr.mxu0 0.0
        %880 = vmatpush1.msra.mxu0 0.0
        %881 = vmatprep.subr.mxu0 0.0
        %882 = vmatpush1.msra.mxu0 0.0
        %883 = vmatprep.subr.mxu0 0.0
        %884 = vmatpush1.msra.mxu0 0.0
        %885 = vmatprep.subr.mxu0 0.0
        %886 = vmatpush1.msra.mxu0 0.0
        %887 = vmatprep.subr.mxu0 0.0
        %888 = vmatpush1.msra.mxu0 0.0
        %889 = vmatprep.subr.mxu0 0.0
        %890 = vmatpush1.msra.mxu0 0.0
        %891 = vmatprep.subr.mxu0 0.0
        %892 = vmatpush1.msra.mxu0 0.0
        %893 = vmatprep.subr.mxu0 0.0
        %894 = vmatpush1.msra.mxu0 0.0
        %895 = vmatprep.subr.mxu0 0.0
        %896 = vmatpush1.msra.mxu0 0.0
        %897 = vmatprep.subr.mxu0 0.0
        %898 = vmatpush1.msra.mxu0 0.0
        %899 = vmatprep.subr.mxu0 0.0
        %900 = vmatpush1.msra.mxu0 0.0
        %901 = vmatprep.subr.mxu0 0.0
        %902 = vmatpush1.msra.mxu0 0.0
        %903 = vmatprep.mubr.f32.mxu0 0.0
        %904 = vmatmul.mubr.f32.gmra.mrb[0].mxu0 %v837
        %v905 = vpop.f32.mrb[0].mxu0
        %v906 = vadd.f32 %v832, %v905
        %v907 = vpop.f32.mrb[0].mxu0
        %908 = vdwg.mxu0
        %v909 = vadd.f32 %v906, %v559
        %v910 = vtanh.pop %v909
        %v911 = vmul.f32 %v910, %v567
        %v912 = vsel %vm408, %v911, 0.0
        %913 = vadd.xlane.f32.xlu0 %v912
        %v914 = vpop.xlane.xlu0 %913
        %v915 = vadd.f32 %v914, %v577
        %v916 = vmax.f32 %v915, 0.0
        %917 = vrot.lane.b32.xlu0 %v581, 126
        %v918 = vpop.permute.xlu0 %917
        %v920 = vmul.f32 %v916, %v918
        %922 = vset.pattern.permute.xlu0 0
        %923 = vperm.xlu0 %922, %v920
        %v924 = vpop.permute.xlu0 %923
        %v926 = vmul.f32 %v924, %v406
        %928 = vrot.lane.b32.xlu0 %v926, 64
        %v929 = vpop.permute.xlu0 %928
        %v931 = vadd.f32 %v760, %v929
        %932 = vrot.lane.b32.xlu0 %v407, 32
        %v933 = vpop.permute.xlu0 %932
        %v934 = vsel %vm408, %v933, 0
        %936 = vmatprep.subr.mxu0 0.0
        %937 = vmatpush1.msra.mxu0 %v399
        %938 = vmatprep.subr.mxu0 0.0
        %939 = vmatpush1.msra.mxu0 %v400
        %940 = vmatprep.subr.mxu0 0.0
        %941 = vmatpush1.msra.mxu0 %v401
        %942 = vmatprep.subr.mxu0 0.0
        %943 = vmatpush1.msra.mxu0 %v402
        %944 = vmatprep.subr.mxu0 0.0
        %945 = vmatpush1.msra.mxu0 0.0
        %946 = vmatprep.subr.mxu0 0.0
        %947 = vmatpush1.msra.mxu0 0.0
        %948 = vmatprep.subr.mxu0 0.0
        %949 = vmatpush1.msra.mxu0 0.0
        %950 = vmatprep.subr.mxu0 0.0
        %951 = vmatpush1.msra.mxu0 0.0
        %952 = vmatprep.subr.mxu0 0.0
        %953 = vmatpush1.msra.mxu0 0.0
        %954 = vmatprep.subr.mxu0 0.0
        %955 = vmatpush1.msra.mxu0 0.0
        %956 = vmatprep.subr.mxu0 0.0
        %957 = vmatpush1.msra.mxu0 0.0
        %958 = vmatprep.subr.mxu0 0.0
        %959 = vmatpush1.msra.mxu0 0.0
        %960 = vmatprep.subr.mxu0 0.0
        %961 = vmatpush1.msra.mxu0 0.0
        %962 = vmatprep.subr.mxu0 0.0
        %963 = vmatpush1.msra.mxu0 0.0
        %964 = vmatprep.subr.mxu0 0.0
        %965 = vmatpush1.msra.mxu0 0.0
        %966 = vmatprep.subr.mxu0 0.0
        %967 = vmatpush1.msra.mxu0 0.0
        %968 = vmatprep.subr.mxu0 0.0
        %969 = vmatpush1.msra.mxu0 0.0
        %970 = vmatprep.subr.mxu0 0.0
        %971 = vmatpush1.msra.mxu0 0.0
        %972 = vmatprep.subr.mxu0 0.0
        %973 = vmatpush1.msra.mxu0 0.0
        %974 = vmatprep.subr.mxu0 0.0
        %975 = vmatpush1.msra.mxu0 0.0
        %976 = vmatprep.subr.mxu0 0.0
        %977 = vmatpush1.msra.mxu0 0.0
        %978 = vmatprep.subr.mxu0 0.0
        %979 = vmatpush1.msra.mxu0 0.0
        %980 = vmatprep.subr.mxu0 0.0
        %981 = vmatpush1.msra.mxu0 0.0
        %982 = vmatprep.subr.mxu0 0.0
        %983 = vmatpush1.msra.mxu0 0.0
        %984 = vmatprep.subr.mxu0 0.0
        %985 = vmatpush1.msra.mxu0 0.0
        %986 = vmatprep.subr.mxu0 0.0
        %987 = vmatpush1.msra.mxu0 0.0
        %988 = vmatprep.subr.mxu0 0.0
        %989 = vmatpush1.msra.mxu0 0.0
        %990 = vmatprep.subr.mxu0 0.0
        %991 = vmatpush1.msra.mxu0 0.0
        %992 = vmatprep.subr.mxu0 0.0
        %993 = vmatpush1.msra.mxu0 0.0
        %994 = vmatprep.subr.mxu0 0.0
        %995 = vmatpush1.msra.mxu0 0.0
        %996 = vmatprep.subr.mxu0 0.0
        %997 = vmatpush1.msra.mxu0 0.0
        %998 = vmatprep.subr.mxu0 0.0
        %999 = vmatpush1.msra.mxu0 0.0
        %1000 = vmatprep.mubr.f32.mxu0 0.0
        %1001 = vmatmul.mubr.f32.gmra.mrb[0].mxu0 %v934
        %v1002 = vpop.f32.mrb[0].mxu0
        %v1003 = vadd.f32 0.0, %v1002
        %v1004 = vpop.f32.mrb[0].mxu0
        %1005 = vdwg.mxu0
        %1006 = vrot.lane.b32.xlu0 %v406, 32
        %v1007 = vpop.permute.xlu0 %1006
        %v1008 = vsel %vm408, %v1007, 0
        %1010 = vmatprep.subr.mxu0 0.0
        %1011 = vmatpush1.msra.mxu0 %v395
        %1012 = vmatprep.subr.mxu0 0.0
        %1013 = vmatpush1.msra.mxu0 %v396
        %1014 = vmatprep.subr.mxu0 0.0
        %1015 = vmatpush1.msra.mxu0 %v397
        %1016 = vmatprep.subr.mxu0 0.0
        %1017 = vmatpush1.msra.mxu0 %v398
        %1018 = vmatprep.subr.mxu0 0.0
        %1019 = vmatpush1.msra.mxu0 0.0
        %1020 = vmatprep.subr.mxu0 0.0
        %1021 = vmatpush1.msra.mxu0 0.0
        %1022 = vmatprep.subr.mxu0 0.0
        %1023 = vmatpush1.msra.mxu0 0.0
        %1024 = vmatprep.subr.mxu0 0.0
        %1025 = vmatpush1.msra.mxu0 0.0
        %1026 = vmatprep.subr.mxu0 0.0
        %1027 = vmatpush1.msra.mxu0 0.0
        %1028 = vmatprep.subr.mxu0 0.0
        %1029 = vmatpush1.msra.mxu0 0.0
        %1030 = vmatprep.subr.mxu0 0.0
        %1031 = vmatpush1.msra.mxu0 0.0
        %1032 = vmatprep.subr.mxu0 0.0
        %1033 = vmatpush1.msra.mxu0 0.0
        %1034 = vmatprep.subr.mxu0 0.0
        %1035 = vmatpush1.msra.mxu0 0.0
        %1036 = vmatprep.subr.mxu0 0.0
        %1037 = vmatpush1.msra.mxu0 0.0
        %1038 = vmatprep.subr.mxu0 0.0
        %1039 = vmatpush1.msra.mxu0 0.0
        %1040 = vmatprep.subr.mxu0 0.0
        %1041 = vmatpush1.msra.mxu0 0.0
        %1042 = vmatprep.subr.mxu0 0.0
        %1043 = vmatpush1.msra.mxu0 0.0
        %1044 = vmatprep.subr.mxu0 0.0
        %1045 = vmatpush1.msra.mxu0 0.0
        %1046 = vmatprep.subr.mxu0 0.0
        %1047 = vmatpush1.msra.mxu0 0.0
        %1048 = vmatprep.subr.mxu0 0.0
        %1049 = vmatpush1.msra.mxu0 0.0
        %1050 = vmatprep.subr.mxu0 0.0
        %1051 = vmatpush1.msra.mxu0 0.0
        %1052 = vmatprep.subr.mxu0 0.0
        %1053 = vmatpush1.msra.mxu0 0.0
        %1054 = vmatprep.subr.mxu0 0.0
        %1055 = vmatpush1.msra.mxu0 0.0
        %1056 = vmatprep.subr.mxu0 0.0
        %1057 = vmatpush1.msra.mxu0 0.0
        %1058 = vmatprep.subr.mxu0 0.0
        %1059 = vmatpush1.msra.mxu0 0.0
        %1060 = vmatprep.subr.mxu0 0.0
        %1061 = vmatpush1.msra.mxu0 0.0
        %1062 = vmatprep.subr.mxu0 0.0
        %1063 = vmatpush1.msra.mxu0 0.0
        %1064 = vmatprep.subr.mxu0 0.0
        %1065 = vmatpush1.msra.mxu0 0.0
        %1066 = vmatprep.subr.mxu0 0.0
        %1067 = vmatpush1.msra.mxu0 0.0
        %1068 = vmatprep.subr.mxu0 0.0
        %1069 = vmatpush1.msra.mxu0 0.0
        %1070 = vmatprep.subr.mxu0 0.0
        %1071 = vmatpush1.msra.mxu0 0.0
        %1072 = vmatprep.subr.mxu0 0.0
        %1073 = vmatpush1.msra.mxu0 0.0
        %1074 = vmatprep.mubr.f32.mxu0 0.0
        %1075 = vmatmul.mubr.f32.gmra.mrb[0].mxu0 %v1008
        %v1076 = vpop.f32.mrb[0].mxu0
        %v1077 = vadd.f32 %v1003, %v1076
        %v1078 = vpop.f32.mrb[0].mxu0
        %1079 = vdwg.mxu0
        %v1080 = vadd.f32 %v1077, %v559
        %v1081 = vtanh.pop %v1080
        %v1082 = vmul.f32 %v1081, %v567
        %v1083 = vsel %vm408, %v1082, 0.0
        %1084 = vadd.xlane.f32.xlu0 %v1083
        %v1085 = vpop.xlane.xlu0 %1084
        %v1086 = vadd.f32 %v1085, %v577
        %v1087 = vmax.f32 %v1086, 0.0
        %1088 = vrot.lane.b32.xlu0 %v581, 125
        %v1089 = vpop.permute.xlu0 %1088
        %v1091 = vmul.f32 %v1087, %v1089
        %1093 = vset.pattern.permute.xlu0 0
        %1094 = vperm.xlu0 %1093, %v1091
        %v1095 = vpop.permute.xlu0 %1094
        %v1097 = vmul.f32 %v1095, %v406
        %1099 = vrot.lane.b32.xlu0 %v1097, 32
        %v1100 = vpop.permute.xlu0 %1099
        %v1102 = vadd.f32 %v931, %v1100
        %v1103 = vld [vmem:[%s331 + $0x8] sm:$0xff]
        %v1104 = vld [vmem:[%s389 + $0x8] sm:$0xff]
        %v1106 = vsel %vm408, %v1104, 0
        %1108 = vmatprep.subr.mxu0 0.0
        %1109 = vmatpush1.msra.mxu0 %v399
        %1110 = vmatprep.subr.mxu0 0.0
        %1111 = vmatpush1.msra.mxu0 %v400
        %1112 = vmatprep.subr.mxu0 0.0
        %1113 = vmatpush1.msra.mxu0 %v401
        %1114 = vmatprep.subr.mxu0 0.0
        %1115 = vmatpush1.msra.mxu0 %v402
        %1116 = vmatprep.subr.mxu0 0.0
        %1117 = vmatpush1.msra.mxu0 0.0
        %1118 = vmatprep.subr.mxu0 0.0
        %1119 = vmatpush1.msra.mxu0 0.0
        %1120 = vmatprep.subr.mxu0 0.0
        %1121 = vmatpush1.msra.mxu0 0.0
        %1122 = vmatprep.subr.mxu0 0.0
        %1123 = vmatpush1.msra.mxu0 0.0
        %1124 = vmatprep.subr.mxu0 0.0
        %1125 = vmatpush1.msra.mxu0 0.0
        %1126 = vmatprep.subr.mxu0 0.0
        %1127 = vmatpush1.msra.mxu0 0.0
        %1128 = vmatprep.subr.mxu0 0.0
        %1129 = vmatpush1.msra.mxu0 0.0
        %1130 = vmatprep.subr.mxu0 0.0
        %1131 = vmatpush1.msra.mxu0 0.0
        %1132 = vmatprep.subr.mxu0 0.0
        %1133 = vmatpush1.msra.mxu0 0.0
        %1134 = vmatprep.subr.mxu0 0.0
        %1135 = vmatpush1.msra.mxu0 0.0
        %1136 = vmatprep.subr.mxu0 0.0
        %1137 = vmatpush1.msra.mxu0 0.0
        %1138 = vmatprep.subr.mxu0 0.0
        %1139 = vmatpush1.msra.mxu0 0.0
        %1140 = vmatprep.subr.mxu0 0.0
        %1141 = vmatpush1.msra.mxu0 0.0
        %1142 = vmatprep.subr.mxu0 0.0
        %1143 = vmatpush1.msra.mxu0 0.0
        %1144 = vmatprep.subr.mxu0 0.0
        %1145 = vmatpush1.msra.mxu0 0.0
        %1146 = vmatprep.subr.mxu0 0.0
        %1147 = vmatpush1.msra.mxu0 0.0
        %1148 = vmatprep.subr.mxu0 0.0
        %1149 = vmatpush1.msra.mxu0 0.0
        %1150 = vmatprep.subr.mxu0 0.0
        %1151 = vmatpush1.msra.mxu0 0.0
        %1152 = vmatprep.subr.mxu0 0.0
        %1153 = vmatpush1.msra.mxu0 0.0
        %1154 = vmatprep.subr.mxu0 0.0
        %1155 = vmatpush1.msra.mxu0 0.0
        %1156 = vmatprep.subr.mxu0 0.0
        %1157 = vmatpush1.msra.mxu0 0.0
        %1158 = vmatprep.subr.mxu0 0.0
        %1159 = vmatpush1.msra.mxu0 0.0
        %1160 = vmatprep.subr.mxu0 0.0
        %1161 = vmatpush1.msra.mxu0 0.0
        %1162 = vmatprep.subr.mxu0 0.0
        %1163 = vmatpush1.msra.mxu0 0.0
        %1164 = vmatprep.subr.mxu0 0.0
        %1165 = vmatpush1.msra.mxu0 0.0
        %1166 = vmatprep.subr.mxu0 0.0
        %1167 = vmatpush1.msra.mxu0 0.0
        %1168 = vmatprep.subr.mxu0 0.0
        %1169 = vmatpush1.msra.mxu0 0.0
        %1170 = vmatprep.subr.mxu0 0.0
        %1171 = vmatpush1.msra.mxu0 0.0
        %1172 = vmatprep.mubr.f32.mxu0 0.0
        %1173 = vmatmul.mubr.f32.gmra.mrb[0].mxu0 %v1106
        %v1174 = vpop.f32.mrb[0].mxu0
        %v1175 = vadd.f32 0.0, %v1174
        %v1176 = vpop.f32.mrb[0].mxu0
        %1177 = vdwg.mxu0
        %v1179 = vsel %vm408, %v1103, 0
        %1181 = vmatprep.subr.mxu0 0.0
        %1182 = vmatpush1.msra.mxu0 %v395
        %1183 = vmatprep.subr.mxu0 0.0
        %1184 = vmatpush1.msra.mxu0 %v396
        %1185 = vmatprep.subr.mxu0 0.0
        %1186 = vmatpush1.msra.mxu0 %v397
        %1187 = vmatprep.subr.mxu0 0.0
        %1188 = vmatpush1.msra.mxu0 %v398
        %1189 = vmatprep.subr.mxu0 0.0
        %1190 = vmatpush1.msra.mxu0 0.0
        %1191 = vmatprep.subr.mxu0 0.0
        %1192 = vmatpush1.msra.mxu0 0.0
        %1193 = vmatprep.subr.mxu0 0.0
        %1194 = vmatpush1.msra.mxu0 0.0
        %1195 = vmatprep.subr.mxu0 0.0
        %1196 = vmatpush1.msra.mxu0 0.0
        %1197 = vmatprep.subr.mxu0 0.0
        %1198 = vmatpush1.msra.mxu0 0.0
        %1199 = vmatprep.subr.mxu0 0.0
        %1200 = vmatpush1.msra.mxu0 0.0
        %1201 = vmatprep.subr.mxu0 0.0
        %1202 = vmatpush1.msra.mxu0 0.0
        %1203 = vmatprep.subr.mxu0 0.0
        %1204 = vmatpush1.msra.mxu0 0.0
        %1205 = vmatprep.subr.mxu0 0.0
        %1206 = vmatpush1.msra.mxu0 0.0
        %1207 = vmatprep.subr.mxu0 0.0
        %1208 = vmatpush1.msra.mxu0 0.0
        %1209 = vmatprep.subr.mxu0 0.0
        %1210 = vmatpush1.msra.mxu0 0.0
        %1211 = vmatprep.subr.mxu0 0.0
        %1212 = vmatpush1.msra.mxu0 0.0
        %1213 = vmatprep.subr.mxu0 0.0
        %1214 = vmatpush1.msra.mxu0 0.0
        %1215 = vmatprep.subr.mxu0 0.0
        %1216 = vmatpush1.msra.mxu0 0.0
        %1217 = vmatprep.subr.mxu0 0.0
        %1218 = vmatpush1.msra.mxu0 0.0
        %1219 = vmatprep.subr.mxu0 0.0
        %1220 = vmatpush1.msra.mxu0 0.0
        %1221 = vmatprep.subr.mxu0 0.0
        %1222 = vmatpush1.msra.mxu0 0.0
        %1223 = vmatprep.subr.mxu0 0.0
        %1224 = vmatpush1.msra.mxu0 0.0
        %1225 = vmatprep.subr.mxu0 0.0
        %1226 = vmatpush1.msra.mxu0 0.0
        %1227 = vmatprep.subr.mxu0 0.0
        %1228 = vmatpush1.msra.mxu0 0.0
        %1229 = vmatprep.subr.mxu0 0.0
        %1230 = vmatpush1.msra.mxu0 0.0
        %1231 = vmatprep.subr.mxu0 0.0
        %1232 = vmatpush1.msra.mxu0 0.0
        %1233 = vmatprep.subr.mxu0 0.0
        %1234 = vmatpush1.msra.mxu0 0.0
        %1235 = vmatprep.subr.mxu0 0.0
        %1236 = vmatpush1.msra.mxu0 0.0
        %1237 = vmatprep.subr.mxu0 0.0
        %1238 = vmatpush1.msra.mxu0 0.0
        %1239 = vmatprep.subr.mxu0 0.0
        %1240 = vmatpush1.msra.mxu0 0.0
        %1241 = vmatprep.subr.mxu0 0.0
        %1242 = vmatpush1.msra.mxu0 0.0
        %1243 = vmatprep.subr.mxu0 0.0
        %1244 = vmatpush1.msra.mxu0 0.0
        %1245 = vmatprep.mubr.f32.mxu0 0.0
        %1246 = vmatmul.mubr.f32.gmra.mrb[0].mxu0 %v1179
        %v1247 = vpop.f32.mrb[0].mxu0
        %v1248 = vadd.f32 %v1175, %v1247
        %v1249 = vpop.f32.mrb[0].mxu0
        %1250 = vdwg.mxu0
        %v1251 = vadd.f32 %v1248, %v559
        %v1252 = vtanh.pop %v1251
        %v1253 = vmul.f32 %v1252, %v567
        %v1254 = vsel %vm408, %v1253, 0.0
        %1255 = vadd.xlane.f32.xlu0 %v1254
        %v1256 = vpop.xlane.xlu0 %1255
        %v1257 = vadd.f32 %v1256, %v577
        %v1258 = vmax.f32 %v1257, 0.0
        %1259 = vrot.lane.b32.xlu0 %v581, 124
        %v1260 = vpop.permute.xlu0 %1259
        %v1262 = vmul.f32 %v1258, %v1260
        %1264 = vset.pattern.permute.xlu0 0
        %1265 = vperm.xlu0 %1264, %v1262
        %v1266 = vpop.permute.xlu0 %1265
        %v1268 = vmul.f32 %v1266, %v1103
        %v1269 = vadd.f32 %v1102, %v1268
        %1270 = vrot.lane.b32.xlu0 %v1104, 96
        %v1271 = vpop.permute.xlu0 %1270
        %v1272 = vsel %vm408, %v1271, 0
        %1274 = vmatprep.subr.mxu0 0.0
        %1275 = vmatpush1.msra.mxu0 %v399
        %1276 = vmatprep.subr.mxu0 0.0
        %1277 = vmatpush1.msra.mxu0 %v400
        %1278 = vmatprep.subr.mxu0 0.0
        %1279 = vmatpush1.msra.mxu0 %v401
        %1280 = vmatprep.subr.mxu0 0.0
        %1281 = vmatpush1.msra.mxu0 %v402
        %1282 = vmatprep.subr.mxu0 0.0
        %1283 = vmatpush1.msra.mxu0 0.0
        %1284 = vmatprep.subr.mxu0 0.0
        %1285 = vmatpush1.msra.mxu0 0.0
        %1286 = vmatprep.subr.mxu0 0.0
        %1287 = vmatpush1.msra.mxu0 0.0
        %1288 = vmatprep.subr.mxu0 0.0
        %1289 = vmatpush1.msra.mxu0 0.0
        %1290 = vmatprep.subr.mxu0 0.0
        %1291 = vmatpush1.msra.mxu0 0.0
        %1292 = vmatprep.subr.mxu0 0.0
        %1293 = vmatpush1.msra.mxu0 0.0
        %1294 = vmatprep.subr.mxu0 0.0
        %1295 = vmatpush1.msra.mxu0 0.0
        %1296 = vmatprep.subr.mxu0 0.0
        %1297 = vmatpush1.msra.mxu0 0.0
        %1298 = vmatprep.subr.mxu0 0.0
        %1299 = vmatpush1.msra.mxu0 0.0
        %1300 = vmatprep.subr.mxu0 0.0
        %1301 = vmatpush1.msra.mxu0 0.0
        %1302 = vmatprep.subr.mxu0 0.0
        %1303 = vmatpush1.msra.mxu0 0.0
        %1304 = vmatprep.subr.mxu0 0.0
        %1305 = vmatpush1.msra.mxu0 0.0
        %1306 = vmatprep.subr.mxu0 0.0
        %1307 = vmatpush1.msra.mxu0 0.0
        %1308 = vmatprep.subr.mxu0 0.0
        %1309 = vmatpush1.msra.mxu0 0.0
        %1310 = vmatprep.subr.mxu0 0.0
        %1311 = vmatpush1.msra.mxu0 0.0
        %1312 = vmatprep.subr.mxu0 0.0
        %1313 = vmatpush1.msra.mxu0 0.0
        %1314 = vmatprep.subr.mxu0 0.0
        %1315 = vmatpush1.msra.mxu0 0.0
        %1316 = vmatprep.subr.mxu0 0.0
        %1317 = vmatpush1.msra.mxu0 0.0
        %1318 = vmatprep.subr.mxu0 0.0
        %1319 = vmatpush1.msra.mxu0 0.0
        %1320 = vmatprep.subr.mxu0 0.0
        %1321 = vmatpush1.msra.mxu0 0.0
        %1322 = vmatprep.subr.mxu0 0.0
        %1323 = vmatpush1.msra.mxu0 0.0
        %1324 = vmatprep.subr.mxu0 0.0
        %1325 = vmatpush1.msra.mxu0 0.0
        %1326 = vmatprep.subr.mxu0 0.0
        %1327 = vmatpush1.msra.mxu0 0.0
        %1328 = vmatprep.subr.mxu0 0.0
        %1329 = vmatpush1.msra.mxu0 0.0
        %1330 = vmatprep.subr.mxu0 0.0
        %1331 = vmatpush1.msra.mxu0 0.0
        %1332 = vmatprep.subr.mxu0 0.0
        %1333 = vmatpush1.msra.mxu0 0.0
        %1334 = vmatprep.subr.mxu0 0.0
        %1335 = vmatpush1.msra.mxu0 0.0
        %1336 = vmatprep.subr.mxu0 0.0
        %1337 = vmatpush1.msra.mxu0 0.0
        %1338 = vmatprep.mubr.f32.mxu0 0.0
        %1339 = vmatmul.mubr.f32.gmra.mrb[0].mxu0 %v1272
        %v1340 = vpop.f32.mrb[0].mxu0
        %v1341 = vadd.f32 0.0, %v1340
        %v1342 = vpop.f32.mrb[0].mxu0
        %1343 = vdwg.mxu0
        %1344 = vrot.lane.b32.xlu0 %v1103, 96
        %v1345 = vpop.permute.xlu0 %1344
        %v1346 = vsel %vm408, %v1345, 0
        %1348 = vmatprep.subr.mxu0 0.0
        %1349 = vmatpush1.msra.mxu0 %v395
        %1350 = vmatprep.subr.mxu0 0.0
        %1351 = vmatpush1.msra.mxu0 %v396
        %1352 = vmatprep.subr.mxu0 0.0
        %1353 = vmatpush1.msra.mxu0 %v397
        %1354 = vmatprep.subr.mxu0 0.0
        %1355 = vmatpush1.msra.mxu0 %v398
        %1356 = vmatprep.subr.mxu0 0.0
        %1357 = vmatpush1.msra.mxu0 0.0
        %1358 = vmatprep.subr.mxu0 0.0
        %1359 = vmatpush1.msra.mxu0 0.0
        %1360 = vmatprep.subr.mxu0 0.0
        %1361 = vmatpush1.msra.mxu0 0.0
        %1362 = vmatprep.subr.mxu0 0.0
        %1363 = vmatpush1.msra.mxu0 0.0
        %1364 = vmatprep.subr.mxu0 0.0
        %1365 = vmatpush1.msra.mxu0 0.0
        %1366 = vmatprep.subr.mxu0 0.0
        %1367 = vmatpush1.msra.mxu0 0.0
        %1368 = vmatprep.subr.mxu0 0.0
        %1369 = vmatpush1.msra.mxu0 0.0
        %1370 = vmatprep.subr.mxu0 0.0
        %1371 = vmatpush1.msra.mxu0 0.0
        %1372 = vmatprep.subr.mxu0 0.0
        %1373 = vmatpush1.msra.mxu0 0.0
        %1374 = vmatprep.subr.mxu0 0.0
        %1375 = vmatpush1.msra.mxu0 0.0
        %1376 = vmatprep.subr.mxu0 0.0
        %1377 = vmatpush1.msra.mxu0 0.0
        %1378 = vmatprep.subr.mxu0 0.0
        %1379 = vmatpush1.msra.mxu0 0.0
        %1380 = vmatprep.subr.mxu0 0.0
        %1381 = vmatpush1.msra.mxu0 0.0
        %1382 = vmatprep.subr.mxu0 0.0
        %1383 = vmatpush1.msra.mxu0 0.0
        %1384 = vmatprep.subr.mxu0 0.0
        %1385 = vmatpush1.msra.mxu0 0.0
        %1386 = vmatprep.subr.mxu0 0.0
        %1387 = vmatpush1.msra.mxu0 0.0
        %1388 = vmatprep.subr.mxu0 0.0
        %1389 = vmatpush1.msra.mxu0 0.0
        %1390 = vmatprep.subr.mxu0 0.0
        %1391 = vmatpush1.msra.mxu0 0.0
        %1392 = vmatprep.subr.mxu0 0.0
        %1393 = vmatpush1.msra.mxu0 0.0
        %1394 = vmatprep.subr.mxu0 0.0
        %1395 = vmatpush1.msra.mxu0 0.0
        %1396 = vmatprep.subr.mxu0 0.0
        %1397 = vmatpush1.msra.mxu0 0.0
        %1398 = vmatprep.subr.mxu0 0.0
        %1399 = vmatpush1.msra.mxu0 0.0
        %1400 = vmatprep.subr.mxu0 0.0
        %1401 = vmatpush1.msra.mxu0 0.0
        %1402 = vmatprep.subr.mxu0 0.0
        %1403 = vmatpush1.msra.mxu0 0.0
        %1404 = vmatprep.subr.mxu0 0.0
        %1405 = vmatpush1.msra.mxu0 0.0
        %1406 = vmatprep.subr.mxu0 0.0
        %1407 = vmatpush1.msra.mxu0 0.0
        %1408 = vmatprep.subr.mxu0 0.0
        %1409 = vmatpush1.msra.mxu0 0.0
        %1410 = vmatprep.subr.mxu0 0.0
        %1411 = vmatpush1.msra.mxu0 0.0
        %1412 = vmatprep.mubr.f32.mxu0 0.0
        %1413 = vmatmul.mubr.f32.gmra.mrb[0].mxu0 %v1346
        %v1414 = vpop.f32.mrb[0].mxu0
        %v1415 = vadd.f32 %v1341, %v1414
        %v1416 = vpop.f32.mrb[0].mxu0
        %1417 = vdwg.mxu0
        %v1418 = vadd.f32 %v1415, %v559
        %v1419 = vtanh.pop %v1418
        %v1420 = vmul.f32 %v1419, %v567
        %v1421 = vsel %vm408, %v1420, 0.0
        %1422 = vadd.xlane.f32.xlu0 %v1421
        %v1423 = vpop.xlane.xlu0 %1422
        %v1424 = vadd.f32 %v1423, %v577
        %v1425 = vmax.f32 %v1424, 0.0
        %1426 = vrot.lane.b32.xlu0 %v581, 123
        %v1427 = vpop.permute.xlu0 %1426
        %v1429 = vmul.f32 %v1425, %v1427
        %1431 = vset.pattern.permute.xlu0 0
        %1432 = vperm.xlu0 %1431, %v1429
        %v1433 = vpop.permute.xlu0 %1432
        %v1435 = vmul.f32 %v1433, %v1103
        %1437 = vrot.lane.b32.xlu0 %v1435, 96
        %v1438 = vpop.permute.xlu0 %1437
        %v1440 = vadd.f32 %v1269, %v1438
        %1441 = vrot.lane.b32.xlu0 %v1104, 64
        %v1442 = vpop.permute.xlu0 %1441
        %v1443 = vsel %vm408, %v1442, 0
        %1445 = vmatprep.subr.mxu0 0.0
        %1446 = vmatpush1.msra.mxu0 %v399
        %1447 = vmatprep.subr.mxu0 0.0
        %1448 = vmatpush1.msra.mxu0 %v400
        %1449 = vmatprep.subr.mxu0 0.0
        %1450 = vmatpush1.msra.mxu0 %v401
        %1451 = vmatprep.subr.mxu0 0.0
        %1452 = vmatpush1.msra.mxu0 %v402
        %1453 = vmatprep.subr.mxu0 0.0
        %1454 = vmatpush1.msra.mxu0 0.0
        %1455 = vmatprep.subr.mxu0 0.0
        %1456 = vmatpush1.msra.mxu0 0.0
        %1457 = vmatprep.subr.mxu0 0.0
        %1458 = vmatpush1.msra.mxu0 0.0
        %1459 = vmatprep.subr.mxu0 0.0
        %1460 = vmatpush1.msra.mxu0 0.0
        %1461 = vmatprep.subr.mxu0 0.0
        %1462 = vmatpush1.msra.mxu0 0.0
        %1463 = vmatprep.subr.mxu0 0.0
        %1464 = vmatpush1.msra.mxu0 0.0
        %1465 = vmatprep.subr.mxu0 0.0
        %1466 = vmatpush1.msra.mxu0 0.0
        %1467 = vmatprep.subr.mxu0 0.0
        %1468 = vmatpush1.msra.mxu0 0.0
        %1469 = vmatprep.subr.mxu0 0.0
        %1470 = vmatpush1.msra.mxu0 0.0
        %1471 = vmatprep.subr.mxu0 0.0
        %1472 = vmatpush1.msra.mxu0 0.0
        %1473 = vmatprep.subr.mxu0 0.0
        %1474 = vmatpush1.msra.mxu0 0.0
        %1475 = vmatprep.subr.mxu0 0.0
        %1476 = vmatpush1.msra.mxu0 0.0
        %1477 = vmatprep.subr.mxu0 0.0
        %1478 = vmatpush1.msra.mxu0 0.0
        %1479 = vmatprep.subr.mxu0 0.0
        %1480 = vmatpush1.msra.mxu0 0.0
        %1481 = vmatprep.subr.mxu0 0.0
        %1482 = vmatpush1.msra.mxu0 0.0
        %1483 = vmatprep.subr.mxu0 0.0
        %1484 = vmatpush1.msra.mxu0 0.0
        %1485 = vmatprep.subr.mxu0 0.0
        %1486 = vmatpush1.msra.mxu0 0.0
        %1487 = vmatprep.subr.mxu0 0.0
        %1488 = vmatpush1.msra.mxu0 0.0
        %1489 = vmatprep.subr.mxu0 0.0
        %1490 = vmatpush1.msra.mxu0 0.0
        %1491 = vmatprep.subr.mxu0 0.0
        %1492 = vmatpush1.msra.mxu0 0.0
        %1493 = vmatprep.subr.mxu0 0.0
        %1494 = vmatpush1.msra.mxu0 0.0
        %1495 = vmatprep.subr.mxu0 0.0
        %1496 = vmatpush1.msra.mxu0 0.0
        %1497 = vmatprep.subr.mxu0 0.0
        %1498 = vmatpush1.msra.mxu0 0.0
        %1499 = vmatprep.subr.mxu0 0.0
        %1500 = vmatpush1.msra.mxu0 0.0
        %1501 = vmatprep.subr.mxu0 0.0
        %1502 = vmatpush1.msra.mxu0 0.0
        %1503 = vmatprep.subr.mxu0 0.0
        %1504 = vmatpush1.msra.mxu0 0.0
        %1505 = vmatprep.subr.mxu0 0.0
        %1506 = vmatpush1.msra.mxu0 0.0
        %1507 = vmatprep.subr.mxu0 0.0
        %1508 = vmatpush1.msra.mxu0 0.0
        %1509 = vmatprep.mubr.f32.mxu0 0.0
        %1510 = vmatmul.mubr.f32.gmra.mrb[0].mxu0 %v1443
        %v1511 = vpop.f32.mrb[0].mxu0
        %v1512 = vadd.f32 0.0, %v1511
        %v1513 = vpop.f32.mrb[0].mxu0
        %1514 = vdwg.mxu0
        %1515 = vrot.lane.b32.xlu0 %v1103, 64
        %v1516 = vpop.permute.xlu0 %1515
        %v1517 = vsel %vm408, %v1516, 0
        %1519 = vmatprep.subr.mxu0 0.0
        %1520 = vmatpush1.msra.mxu0 %v395
        %1521 = vmatprep.subr.mxu0 0.0
        %1522 = vmatpush1.msra.mxu0 %v396
        %1523 = vmatprep.subr.mxu0 0.0
        %1524 = vmatpush1.msra.mxu0 %v397
        %1525 = vmatprep.subr.mxu0 0.0
        %1526 = vmatpush1.msra.mxu0 %v398
        %1527 = vmatprep.subr.mxu0 0.0
        %1528 = vmatpush1.msra.mxu0 0.0
        %1529 = vmatprep.subr.mxu0 0.0
        %1530 = vmatpush1.msra.mxu0 0.0
        %1531 = vmatprep.subr.mxu0 0.0
        %1532 = vmatpush1.msra.mxu0 0.0
        %1533 = vmatprep.subr.mxu0 0.0
        %1534 = vmatpush1.msra.mxu0 0.0
        %1535 = vmatprep.subr.mxu0 0.0
        %1536 = vmatpush1.msra.mxu0 0.0
        %1537 = vmatprep.subr.mxu0 0.0
        %1538 = vmatpush1.msra.mxu0 0.0
        %1539 = vmatprep.subr.mxu0 0.0
        %1540 = vmatpush1.msra.mxu0 0.0
        %1541 = vmatprep.subr.mxu0 0.0
        %1542 = vmatpush1.msra.mxu0 0.0
        %1543 = vmatprep.subr.mxu0 0.0
        %1544 = vmatpush1.msra.mxu0 0.0
        %1545 = vmatprep.subr.mxu0 0.0
        %1546 = vmatpush1.msra.mxu0 0.0
        %1547 = vmatprep.subr.mxu0 0.0
        %1548 = vmatpush1.msra.mxu0 0.0
        %1549 = vmatprep.subr.mxu0 0.0
        %1550 = vmatpush1.msra.mxu0 0.0
        %1551 = vmatprep.subr.mxu0 0.0
        %1552 = vmatpush1.msra.mxu0 0.0
        %1553 = vmatprep.subr.mxu0 0.0
        %1554 = vmatpush1.msra.mxu0 0.0
        %1555 = vmatprep.subr.mxu0 0.0
        %1556 = vmatpush1.msra.mxu0 0.0
        %1557 = vmatprep.subr.mxu0 0.0
        %1558 = vmatpush1.msra.mxu0 0.0
        %1559 = vmatprep.subr.mxu0 0.0
        %1560 = vmatpush1.msra.mxu0 0.0
        %1561 = vmatprep.subr.mxu0 0.0
        %1562 = vmatpush1.msra.mxu0 0.0
        %1563 = vmatprep.subr.mxu0 0.0
        %1564 = vmatpush1.msra.mxu0 0.0
        %1565 = vmatprep.subr.mxu0 0.0
        %1566 = vmatpush1.msra.mxu0 0.0
        %1567 = vmatprep.subr.mxu0 0.0
        %1568 = vmatpush1.msra.mxu0 0.0
        %1569 = vmatprep.subr.mxu0 0.0
        %1570 = vmatpush1.msra.mxu0 0.0
        %1571 = vmatprep.subr.mxu0 0.0
        %1572 = vmatpush1.msra.mxu0 0.0
        %1573 = vmatprep.subr.mxu0 0.0
        %1574 = vmatpush1.msra.mxu0 0.0
        %1575 = vmatprep.subr.mxu0 0.0
        %1576 = vmatpush1.msra.mxu0 0.0
        %1577 = vmatprep.subr.mxu0 0.0
        %1578 = vmatpush1.msra.mxu0 0.0
        %1579 = vmatprep.subr.mxu0 0.0
        %1580 = vmatpush1.msra.mxu0 0.0
        %1581 = vmatprep.subr.mxu0 0.0
        %1582 = vmatpush1.msra.mxu0 0.0
        %1583 = vmatprep.mubr.f32.mxu0 0.0
        %1584 = vmatmul.mubr.f32.gmra.mrb[0].mxu0 %v1517
        %v1585 = vpop.f32.mrb[0].mxu0
        %v1586 = vadd.f32 %v1512, %v1585
        %v1587 = vpop.f32.mrb[0].mxu0
        %1588 = vdwg.mxu0
        %v1589 = vadd.f32 %v1586, %v559
        %v1590 = vtanh.pop %v1589
        %v1591 = vmul.f32 %v1590, %v567
        %v1592 = vsel %vm408, %v1591, 0.0
        %1593 = vadd.xlane.f32.xlu0 %v1592
        %v1594 = vpop.xlane.xlu0 %1593
        %v1595 = vadd.f32 %v1594, %v577
        %v1596 = vmax.f32 %v1595, 0.0
        %1597 = vrot.lane.b32.xlu0 %v581, 122
        %v1598 = vpop.permute.xlu0 %1597
        %v1600 = vmul.f32 %v1596, %v1598
        %1602 = vset.pattern.permute.xlu0 0
        %1603 = vperm.xlu0 %1602, %v1600
        %v1604 = vpop.permute.xlu0 %1603
        %v1606 = vmul.f32 %v1604, %v1103
        %1608 = vrot.lane.b32.xlu0 %v1606, 64
        %v1609 = vpop.permute.xlu0 %1608
        %v1611 = vadd.f32 %v1440, %v1609
        %1612 = vrot.lane.b32.xlu0 %v1104, 32
        %v1613 = vpop.permute.xlu0 %1612
        %v1614 = vsel %vm408, %v1613, 0
        %1616 = vmatprep.subr.mxu0 0.0
        %1617 = vmatpush1.msra.mxu0 %v399
        %1618 = vmatprep.subr.mxu0 0.0
        %1619 = vmatpush1.msra.mxu0 %v400
        %1620 = vmatprep.subr.mxu0 0.0
        %1621 = vmatpush1.msra.mxu0 %v401
        %1622 = vmatprep.subr.mxu0 0.0
        %1623 = vmatpush1.msra.mxu0 %v402
        %1624 = vmatprep.subr.mxu0 0.0
        %1625 = vmatpush1.msra.mxu0 0.0
        %1626 = vmatprep.subr.mxu0 0.0
        %1627 = vmatpush1.msra.mxu0 0.0
        %1628 = vmatprep.subr.mxu0 0.0
        %1629 = vmatpush1.msra.mxu0 0.0
        %1630 = vmatprep.subr.mxu0 0.0
        %1631 = vmatpush1.msra.mxu0 0.0
        %1632 = vmatprep.subr.mxu0 0.0
        %1633 = vmatpush1.msra.mxu0 0.0
        %1634 = vmatprep.subr.mxu0 0.0
        %1635 = vmatpush1.msra.mxu0 0.0
        %1636 = vmatprep.subr.mxu0 0.0
        %1637 = vmatpush1.msra.mxu0 0.0
        %1638 = vmatprep.subr.mxu0 0.0
        %1639 = vmatpush1.msra.mxu0 0.0
        %1640 = vmatprep.subr.mxu0 0.0
        %1641 = vmatpush1.msra.mxu0 0.0
        %1642 = vmatprep.subr.mxu0 0.0
        %1643 = vmatpush1.msra.mxu0 0.0
        %1644 = vmatprep.subr.mxu0 0.0
        %1645 = vmatpush1.msra.mxu0 0.0
        %1646 = vmatprep.subr.mxu0 0.0
        %1647 = vmatpush1.msra.mxu0 0.0
        %1648 = vmatprep.subr.mxu0 0.0
        %1649 = vmatpush1.msra.mxu0 0.0
        %1650 = vmatprep.subr.mxu0 0.0
        %1651 = vmatpush1.msra.mxu0 0.0
        %1652 = vmatprep.subr.mxu0 0.0
        %1653 = vmatpush1.msra.mxu0 0.0
        %1654 = vmatprep.subr.mxu0 0.0
        %1655 = vmatpush1.msra.mxu0 0.0
        %1656 = vmatprep.subr.mxu0 0.0
        %1657 = vmatpush1.msra.mxu0 0.0
        %1658 = vmatprep.subr.mxu0 0.0
        %1659 = vmatpush1.msra.mxu0 0.0
        %1660 = vmatprep.subr.mxu0 0.0
        %1661 = vmatpush1.msra.mxu0 0.0
        %1662 = vmatprep.subr.mxu0 0.0
        %1663 = vmatpush1.msra.mxu0 0.0
        %1664 = vmatprep.subr.mxu0 0.0
        %1665 = vmatpush1.msra.mxu0 0.0
        %1666 = vmatprep.subr.mxu0 0.0
        %1667 = vmatpush1.msra.mxu0 0.0
        %1668 = vmatprep.subr.mxu0 0.0
        %1669 = vmatpush1.msra.mxu0 0.0
        %1670 = vmatprep.subr.mxu0 0.0
        %1671 = vmatpush1.msra.mxu0 0.0
        %1672 = vmatprep.subr.mxu0 0.0
        %1673 = vmatpush1.msra.mxu0 0.0
        %1674 = vmatprep.subr.mxu0 0.0
        %1675 = vmatpush1.msra.mxu0 0.0
        %1676 = vmatprep.subr.mxu0 0.0
        %1677 = vmatpush1.msra.mxu0 0.0
        %1678 = vmatprep.subr.mxu0 0.0
        %1679 = vmatpush1.msra.mxu0 0.0
        %1680 = vmatprep.mubr.f32.mxu0 0.0
        %1681 = vmatmul.mubr.f32.gmra.mrb[0].mxu0 %v1614
        %v1682 = vpop.f32.mrb[0].mxu0
        %v1683 = vadd.f32 0.0, %v1682
        %v1684 = vpop.f32.mrb[0].mxu0
        %1685 = vdwg.mxu0
        %1686 = vrot.lane.b32.xlu0 %v1103, 32
        %v1687 = vpop.permute.xlu0 %1686
        %v1688 = vsel %vm408, %v1687, 0
        %1690 = vmatprep.subr.mxu0 0.0
        %1691 = vmatpush1.msra.mxu0 %v395
        %1692 = vmatprep.subr.mxu0 0.0
        %1693 = vmatpush1.msra.mxu0 %v396
        %1694 = vmatprep.subr.mxu0 0.0
        %1695 = vmatpush1.msra.mxu0 %v397
        %1696 = vmatprep.subr.mxu0 0.0
        %1697 = vmatpush1.msra.mxu0 %v398
        %1698 = vmatprep.subr.mxu0 0.0
        %1699 = vmatpush1.msra.mxu0 0.0
        %1700 = vmatprep.subr.mxu0 0.0
        %1701 = vmatpush1.msra.mxu0 0.0
        %1702 = vmatprep.subr.mxu0 0.0
        %1703 = vmatpush1.msra.mxu0 0.0
        %1704 = vmatprep.subr.mxu0 0.0
        %1705 = vmatpush1.msra.mxu0 0.0
        %1706 = vmatprep.subr.mxu0 0.0
        %1707 = vmatpush1.msra.mxu0 0.0
        %1708 = vmatprep.subr.mxu0 0.0
        %1709 = vmatpush1.msra.mxu0 0.0
        %1710 = vmatprep.subr.mxu0 0.0
        %1711 = vmatpush1.msra.mxu0 0.0
        %1712 = vmatprep.subr.mxu0 0.0
        %1713 = vmatpush1.msra.mxu0 0.0
        %1714 = vmatprep.subr.mxu0 0.0
        %1715 = vmatpush1.msra.mxu0 0.0
        %1716 = vmatprep.subr.mxu0 0.0
        %1717 = vmatpush1.msra.mxu0 0.0
        %1718 = vmatprep.subr.mxu0 0.0
        %1719 = vmatpush1.msra.mxu0 0.0
        %1720 = vmatprep.subr.mxu0 0.0
        %1721 = vmatpush1.msra.mxu0 0.0
        %1722 = vmatprep.subr.mxu0 0.0
        %1723 = vmatpush1.msra.mxu0 0.0
        %1724 = vmatprep.subr.mxu0 0.0
        %1725 = vmatpush1.msra.mxu0 0.0
        %1726 = vmatprep.subr.mxu0 0.0
        %1727 = vmatpush1.msra.mxu0 0.0
        %1728 = vmatprep.subr.mxu0 0.0
        %1729 = vmatpush1.msra.mxu0 0.0
        %1730 = vmatprep.subr.mxu0 0.0
        %1731 = vmatpush1.msra.mxu0 0.0
        %1732 = vmatprep.subr.mxu0 0.0
        %1733 = vmatpush1.msra.mxu0 0.0
        %1734 = vmatprep.subr.mxu0 0.0
        %1735 = vmatpush1.msra.mxu0 0.0
        %1736 = vmatprep.subr.mxu0 0.0
        %1737 = vmatpush1.msra.mxu0 0.0
        %1738 = vmatprep.subr.mxu0 0.0
        %1739 = vmatpush1.msra.mxu0 0.0
        %1740 = vmatprep.subr.mxu0 0.0
        %1741 = vmatpush1.msra.mxu0 0.0
        %1742 = vmatprep.subr.mxu0 0.0
        %1743 = vmatpush1.msra.mxu0 0.0
        %1744 = vmatprep.subr.mxu0 0.0
        %1745 = vmatpush1.msra.mxu0 0.0
        %1746 = vmatprep.subr.mxu0 0.0
        %1747 = vmatpush1.msra.mxu0 0.0
        %1748 = vmatprep.subr.mxu0 0.0
        %1749 = vmatpush1.msra.mxu0 0.0
        %1750 = vmatprep.subr.mxu0 0.0
        %1751 = vmatpush1.msra.mxu0 0.0
        %1752 = vmatprep.subr.mxu0 0.0
        %1753 = vmatpush1.msra.mxu0 0.0
        %1754 = vmatprep.mubr.f32.mxu0 0.0
        %1755 = vmatmul.mubr.f32.gmra.mrb[0].mxu0 %v1688
        %v1756 = vpop.f32.mrb[0].mxu0
        %v1757 = vadd.f32 %v1683, %v1756
        %v1758 = vpop.f32.mrb[0].mxu0
        %1759 = vdwg.mxu0
        %v1760 = vadd.f32 %v1757, %v559
        %v1761 = vtanh.pop %v1760
        %v1762 = vmul.f32 %v1761, %v567
        %v1763 = vsel %vm408, %v1762, 0.0
        %1764 = vadd.xlane.f32.xlu0 %v1763
        %v1765 = vpop.xlane.xlu0 %1764
        %v1766 = vadd.f32 %v1765, %v577
        %v1767 = vmax.f32 %v1766, 0.0
        %1768 = vrot.lane.b32.xlu0 %v581, 121
        %v1769 = vpop.permute.xlu0 %1768
        %v1771 = vmul.f32 %v1767, %v1769
        %1773 = vset.pattern.permute.xlu0 0
        %1774 = vperm.xlu0 %1773, %v1771
        %v1775 = vpop.permute.xlu0 %1774
        %v1777 = vmul.f32 %v1775, %v1103
        %1779 = vrot.lane.b32.xlu0 %v1777, 32
        %v1780 = vpop.permute.xlu0 %1779
        %v1782 = vadd.f32 %v1611, %v1780
        %v1783 = vadd.f32 %v394, 1e-10
        %v1784 = vrcp.pop %v1783
        %v1785 = vmul.f32 %v1782, %v1784
        %1786 = vst.msk [vmem:[%s380] sm:$0xff] %vm408, %v1785
        %s1787 = sand.u32 %s219, 1
        %s1788 = scalar_lea.sflag [#allocation5], %s1787
        %s1789 = sand.u32 %s219, 1
        %s1790 = smul.addr %s1789, 8
        %s1791 = scalar_lea.vmem [#allocation9], %s1790
        // Predicated region
        $region65: #{tpu_custom_call.1} parent=51 // pred_check
          %p1792 = pneg %p229
        $region66: #{tpu_custom_call.1} parent=51 // pred_check_branch
          %1794 = sbr.rel (%p1792) target = $region68
        $region67: #{tpu_custom_call.1} parent=51 // pred_region
          %s1796 = ssub.s32 128, 128
          %1797 = vsyncadd %s1788, %s1796
          %s1798 = smul.addr %s28, 128
          %s1799 = scalar_lea.hbm %s8, %s1798
          %s1801 = sshll.u32 %s1791, 4
          %s1802 = int_to_ptr.vmem [resolvable:$true] %s1801
          %1804 = dma.vmem_to_hbm [thread:$0]  %s1802, 128, %s1799, %s1788
        $region68: #{tpu_custom_call.1} parent=51 // pred_fallthru
          _
      $region52: #{tpu_custom_call.1} parent=5 // pred_fallthru
        _
      %p1805 = scmp.le.s32.totalorder 2, %s23
      // Predicated region
      $region69: #{tpu_custom_call.1} parent=5 // pred_check
        %p1806 = pneg %p1805
      $region70: #{tpu_custom_call.1} parent=5 // pred_check_branch
        %1808 = sbr.rel (%p1806) target = $region72
      $region71: #{tpu_custom_call.1} parent=5 // pred_region
        %s1809 = ssub.s32 %s23, 2
        // Predicated region
        $region73: #{tpu_custom_call.1} parent=71 // pred_check
          %p1810 = pneg %p235
        $region74: #{tpu_custom_call.1} parent=71 // pred_check_branch
          %1812 = sbr.rel (%p1810) target = $region76
        $region75: #{tpu_custom_call.1} parent=71 // pred_region
          %s1813 = sand.u32 %s220, 1
          %s1814 = scalar_lea.sflag [#allocation5], %s1813
          %s1815 = sand.u32 %s220, 1
          %s1816 = smul.addr %s1815, 8
          %s1817 = scalar_lea.vmem [#allocation9], %s1816
          %1818 = dma.done %s1814, 128
        $region76: #{tpu_custom_call.1} parent=71 // pred_fallthru
          _
      $region72: #{tpu_custom_call.1} parent=5 // pred_fallthru
        _
    $region6: #{tpu_custom_call.1} parent=1 // loop_footer
      %s27 = sadd.s32 1, %s23
    $region7: #{tpu_custom_call.1} parent=1 // loop_footer_branch
      %22 = sbr.rel target = $region3
    $region8: #{tpu_custom_call.1} parent=1 // loop_exit
      _
    %1819 = vsyncpa [#allocation4], 1
    %s1820 = scalar_lea.sflag [#allocation4], 1
    %1821 = vsyncpa %s1820, 1
    %1822 = vsyncpa [#allocation7], 1
    %1823 = vsyncpa [#allocation5], 1
    %s1824 = scalar_lea.sflag [#allocation5], 1
    %1825 = vsyncpa %s1824, 1

</llo_original>
